<compile_context>
chip_gen: v7x
topology: tpu7x:2x2x1
jax: 0.10.0
libtpu: 0.0.40
codegen_flags: <defaults>
</compile_context>

<pallas_src>
import jax
import jax.numpy as jnp
from jax.experimental import pallas as pl
from jax.experimental.pallas import tpu as pltpu

IN_DIM = 21 * 3      # 63
IN_PAD = 64          # fc1 K padded to a sublane-friendly 64
H_DIM = 512
ACTION_NUM = 4
Z_DIM = 32
OUT_DIM = 2 * Z_DIM  # fused [mu | logvar] = 64
OUT_PAD = 128        # lane-dense output slab width
BN_EPS = 1e-5
LRELU_SLOPE = 0.01


def _elementwise_dtype():
    """bf16 elementwise chain on bf16-native VPUs (v6e/v7x); f32 otherwise (v5e)."""
    try:
        kind = jax.devices()[0].device_kind.lower()
    except Exception:
        return jnp.float32
    if "v6" in kind or "v7" in kind:
        return jnp.bfloat16
    return jnp.float32


_COMPUTE_DTYPE = _elementwise_dtype()


def _leaky_relu(x):
    # mul + max (2 VPU ops/elem) instead of cmp + mul + select (3 ops/elem).
    return jnp.maximum(x, LRELU_SLOPE * x)


def _batch_stats(x):
    # One-pass batch mean / biased variance in f32 (no centered temporary).
    xf = x.astype(jnp.float32)
    m = jnp.mean(xf, axis=0, keepdims=True)
    v = jnp.maximum(jnp.mean(xf * xf, axis=0, keepdims=True) - m * m, 0.0)
    return m, v


def _make_kernel(compute_dtype):
    def kernel(
        x_ref,       # (B, 64)        f32  (col 63 zero-padded)
        a_ref,       # (B, 4)         f32
        w1_ref,      # (64, 512)      f32  fc1 weight (row 63 zero)
        w2h_ref,     # (512, 512)     bf16 fc2 hidden weight
        wouth_ref,   # (512, 128)     f32  [wmu_h | wlogvar_h | 0]
        wact_ref,    # (4, 640)       f32  [w2_a (512) | wmu_a|wlv_a|0 (128)]
        vec512_ref,  # (4, 512)       f32  rows: b1, g2h, bt2h, b2
        small_ref,   # (5, 128)       f32  rows: g1, bt1, g2a, bt2a, bout
        out_ref,     # (B, 128)       f32  [mu | logvar | 0]
    ):
        f32 = jnp.float32
        bf16 = jnp.bfloat16

        x = x_ref[...]
        a = a_ref[...]
        small = small_ref[...]
        vecs = vec512_ref[...]

        g1 = small[0:1, :IN_PAD]
        bt1 = small[1:2, :IN_PAD]
        g2a = small[2:3, :ACTION_NUM]
        bt2a = small[3:4, :ACTION_NUM]
        bout = small[4:5, :]                       # (1, 128), zero past OUT_DIM

        b1 = vecs[0:1, :]
        g2h = vecs[1:2, :]
        bt2h = vecs[2:3, :]
        b2 = vecs[3:4, :]

        w2a = wact_ref[:, :H_DIM]                  # (4, 512)
        wouta = wact_ref[:, H_DIM:]                # (4, 128)
        w1 = w1_ref[...]                           # (64, 512) f32

        # --- BN1 folded into fc1: one scale mul/elem, offset through W on MXU ---
        m1, v1 = _batch_stats(x)
        s1 = g1 * jax.lax.rsqrt(v1 + BN_EPS)                           # (1, 64)
        c1 = bt1 - m1 * s1                                             # (1, 64)
        z1 = jnp.dot(x * s1, w1, preferred_element_type=f32)           # (B, 512)
        bias1 = b1 + jnp.dot(c1, w1, preferred_element_type=f32)       # (1, 512)
        h = _leaky_relu((z1 + bias1).astype(compute_dtype))            # (B, 512)

        # --- BN2 folded into fc2 (split over the [h | a] halves of the concat) ---
        m2h, v2h = _batch_stats(h)
        s2h = g2h * jax.lax.rsqrt(v2h + BN_EPS)                        # (1, 512)
        c2h = bt2h - m2h * s2h
        m2a, v2a = _batch_stats(a)
        s2a = g2a * jax.lax.rsqrt(v2a + BN_EPS)                        # (1, 4)
        c2a = bt2a - m2a * s2a

        w2h = w2h_ref[...]                                             # bf16
        hn = (h * s2h.astype(compute_dtype)).astype(bf16)              # 1 mul/elem
        z2 = jnp.dot(hn, w2h, preferred_element_type=f32)              # (B, 512)
        z2 = z2 + jnp.dot(a * s2a, w2a, preferred_element_type=f32)    # K=4 on MXU
        bias2 = (b2
                 + jnp.dot(c2h.astype(bf16), w2h, preferred_element_type=f32)
                 + jnp.dot(c2a, w2a, preferred_element_type=f32))      # (1, 512)
        h2 = _leaky_relu((z2 + bias2).astype(compute_dtype))

        # --- fused lane-dense [fc_mu | fc_logvar | 0] head (f32 for accuracy) ---
        out = jnp.dot(h2.astype(f32), wouth_ref[...], preferred_element_type=f32)
        out = out + jnp.dot(a, wouta, preferred_element_type=f32) + bout
        out_ref[...] = out                                             # (B, 128)

    return kernel


@jax.jit
def pose_vae_encoder(x, a, packed):
    """x: (B, 63) f32, a: (B, 4) f32 -> (mu (B, 32), logvar (B, 32))."""
    B = x.shape[0]
    w1, w2h, wouth, wact, vec512, small = packed
    x_pad = jnp.pad(x, ((0, 0), (0, IN_PAD - IN_DIM)))
    vmem = pl.BlockSpec(memory_space=pltpu.MemorySpace.VMEM)
    out = pl.pallas_call(
        _make_kernel(_COMPUTE_DTYPE),
        out_shape=jax.ShapeDtypeStruct((B, OUT_PAD), jnp.float32),
        in_specs=[vmem] * 8,
        out_specs=vmem,
        compiler_params=pltpu.CompilerParams(
            vmem_limit_bytes=48 * 1024 * 1024),
    )(x_pad, a, w1, w2h, wouth, wact, vec512, small)
    return out[:, :Z_DIM], out[:, Z_DIM:OUT_DIM]


def make_params(key):
    """Deterministic synthetic parameters (PyTorch-like uniform init), f32."""
    ks = jax.random.split(key, 8)

    def lin(k, fan_in, fan_out):
        bound = 1.0 / jnp.sqrt(fan_in)
        kw, kb = jax.random.split(k)
        w = jax.random.uniform(kw, (fan_in, fan_out), jnp.float32, -bound, bound)
        b = jax.random.uniform(kb, (1, fan_out), jnp.float32, -bound, bound)
        return w, b

    g1 = jax.random.uniform(ks[0], (1, IN_DIM), jnp.float32, 0.5, 1.5)
    bt1 = jax.random.uniform(ks[1], (1, IN_DIM), jnp.float32, -0.5, 0.5)
    w1, b1 = lin(ks[2], IN_DIM, H_DIM)
    g2 = jax.random.uniform(ks[3], (1, H_DIM + ACTION_NUM), jnp.float32, 0.5, 1.5)
    bt2 = jax.random.uniform(ks[4], (1, H_DIM + ACTION_NUM), jnp.float32, -0.5, 0.5)
    g2h, g2a = g2[:, :H_DIM], g2[:, H_DIM:]
    bt2h, bt2a = bt2[:, :H_DIM], bt2[:, H_DIM:]
    w2, b2 = lin(ks[5], H_DIM + ACTION_NUM, H_DIM)
    w2h, w2a = w2[:H_DIM, :], w2[H_DIM:, :]
    wmu, bmu = lin(ks[6], H_DIM + ACTION_NUM, Z_DIM)
    wmuh, wmua = wmu[:H_DIM, :], wmu[H_DIM:, :]
    wlv, blv = lin(ks[7], H_DIM + ACTION_NUM, Z_DIM)
    wlvh, wlva = wlv[:H_DIM, :], wlv[H_DIM:, :]

    return (g1, bt1, w1, b1,
            g2h, bt2h, g2a, bt2a,
            w2h, w2a, b2,
            wmuh, wmua, bmu,
            wlvh, wlva, blv)


def pack_params(params):
    """Pack PyTorch-layout params into the kernel's fused / padded form."""
    (g1, bt1, w1, b1, g2h, bt2h, g2a, bt2a,
     w2h, w2a, b2, wmuh, wmua, bmu, wlvh, wlva, blv) = params
    f32 = jnp.float32

    # fc1 weight, K padded 63 -> 64 with a zero row (f32: tiny, keeps precision).
    w1_p = jnp.zeros((IN_PAD, H_DIM), f32).at[:IN_DIM, :].set(w1)

    # fc2 hidden weight is the only bf16 matrix (f32 MXU accumulation in-kernel).
    w2h_bf = w2h.astype(jnp.bfloat16)

    # Fused [fc_mu | fc_logvar] hidden weight, padded to 128 lanes (lane-dense store).
    wouth_p = jnp.zeros((H_DIM, OUT_PAD), f32)
    wouth_p = wouth_p.at[:, :Z_DIM].set(wmuh).at[:, Z_DIM:OUT_DIM].set(wlvh)

    # Action weights packed: [w2_a (4,512) | wmu_a|wlv_a|0 (4,128)] -> (4, 640).
    wact = jnp.zeros((ACTION_NUM, H_DIM + OUT_PAD), f32)
    wact = wact.at[:, :H_DIM].set(w2a)
    wact = wact.at[:, H_DIM:H_DIM + Z_DIM].set(wmua)
    wact = wact.at[:, H_DIM + Z_DIM:H_DIM + OUT_DIM].set(wlva)

    vec512 = jnp.concatenate([b1, g2h, bt2h, b2], axis=0).astype(f32)   # (4, 512)

    small = jnp.zeros((5, 128), f32)
    small = small.at[0, :IN_DIM].set(g1[0]).at[0, IN_DIM:IN_PAD].set(1.0)
    small = small.at[1, :IN_DIM].set(bt1[0])
    small = small.at[2, :ACTION_NUM].set(g2a[0])
    small = small.at[3, :ACTION_NUM].set(bt2a[0])
    small = small.at[4, :Z_DIM].set(bmu[0]).at[4, Z_DIM:OUT_DIM].set(blv[0])

    return (w1_p, w2h_bf, wouth_p, wact, vec512, small)


def reference_forward(x, a, params):
    """Pure-JAX f32 reference mirroring the PyTorch module (training-mode BN)."""
    (g1, bt1, w1, b1, g2h, bt2h, g2a, bt2a,
     w2h, w2a, b2, wmuh, wmua, bmu, wlvh, wlva, blv) = params

    def bn(x, g, b):
        m = jnp.mean(x, axis=0, keepdims=True)
        v = jnp.mean((x - m) ** 2, axis=0, keepdims=True)
        return (x - m) / jnp.sqrt(v + BN_EPS) * g + b

    def lrelu(x):
        return jnp.where(x >= 0, x, LRELU_SLOPE * x)

    net = bn(x, g1, bt1)
    net = lrelu(net @ w1 + b1)
    net = jnp.concatenate([net, a], axis=1)
    net = bn(net, jnp.concatenate([g2h, g2a], axis=1),
             jnp.concatenate([bt2h, bt2a], axis=1))
    net = lrelu(net @ jnp.concatenate([w2h, w2a], axis=0) + b2)
    net = jnp.concatenate([net, a], axis=1)
    mu = net @ jnp.concatenate([wmuh, wmua], axis=0) + bmu
    logvar = net @ jnp.concatenate([wlvh, wlva], axis=0) + blv
    return mu, logvar


if __name__ == "__main__":
    key = jax.random.PRNGKey(0)
    kx, ka, kp = jax.random.split(key, 3)

    B = 8
    x = jax.random.normal(kx, (B, IN_DIM), jnp.float32)
    a = jax.random.normal(ka, (B, ACTION_NUM), jnp.float32)
    params = make_params(kp)
    packed = pack_params(params)

    mu, logvar = pose_vae_encoder(x, a, packed)
    jax.block_until_ready((mu, logvar))

    mu_ref, logvar_ref = reference_forward(x, a, params)
    assert mu.shape == (B, Z_DIM) and logvar.shape == (B, Z_DIM)
    # bf16 fc2 weights / activations at the dot boundary -> loosened tolerance.
    assert jnp.allclose(mu, mu_ref, atol=5e-2, rtol=5e-2)
    assert jnp.allclose(logvar, logvar_ref, atol=5e-2, rtol=5e-2)

    print("KERNEL_OK")
</pallas_src>

<mosaic_0001>
module attributes {stable_mosaic.version = 11 : i64} {
  func.func @kernel(%arg0: memref<8x64xf32, #tpu.memory_space<vmem>>, %arg1: memref<8x4xf32, #tpu.memory_space<vmem>>, %arg2: memref<64x512xf32, #tpu.memory_space<vmem>>, %arg3: memref<512x512xbf16, #tpu.memory_space<vmem>>, %arg4: memref<512x128xf32, #tpu.memory_space<vmem>>, %arg5: memref<4x640xf32, #tpu.memory_space<vmem>>, %arg6: memref<4x512xf32, #tpu.memory_space<vmem>>, %arg7: memref<5x128xf32, #tpu.memory_space<vmem>>, %arg8: memref<8x128xf32, #tpu.memory_space<vmem>>) attributes {dimension_semantics = [], scalar_prefetch = 0 : i64, scratch_operands = 0 : i64, tpu.core_type = #tpu.core_type<tc>} {
    %c0 = arith.constant 0 : index
    %c0_0 = arith.constant 0 : index
    %0 = vector.load %arg0[%c0, %c0_0] : memref<8x64xf32, #tpu.memory_space<vmem>>, vector<8x64xf32>
    %c0_1 = arith.constant 0 : index
    %c0_2 = arith.constant 0 : index
    %1 = vector.load %arg1[%c0_1, %c0_2] : memref<8x4xf32, #tpu.memory_space<vmem>>, vector<8x4xf32>
    %c0_3 = arith.constant 0 : index
    %c0_4 = arith.constant 0 : index
    %2 = vector.load %arg7[%c0_3, %c0_4] : memref<5x128xf32, #tpu.memory_space<vmem>>, vector<5x128xf32>
    %c0_5 = arith.constant 0 : index
    %c0_6 = arith.constant 0 : index
    %3 = vector.load %arg6[%c0_5, %c0_6] : memref<4x512xf32, #tpu.memory_space<vmem>>, vector<4x512xf32>
    %4 = vector.extract_strided_slice %2 {offsets = [0, 0], sizes = [1, 64], strides = [1, 1]} : vector<5x128xf32> to vector<1x64xf32>
    %5 = vector.extract_strided_slice %2 {offsets = [1, 0], sizes = [1, 64], strides = [1, 1]} : vector<5x128xf32> to vector<1x64xf32>
    %6 = vector.extract_strided_slice %2 {offsets = [2, 0], sizes = [1, 4], strides = [1, 1]} : vector<5x128xf32> to vector<1x4xf32>
    %7 = vector.extract_strided_slice %2 {offsets = [3, 0], sizes = [1, 4], strides = [1, 1]} : vector<5x128xf32> to vector<1x4xf32>
    %8 = vector.extract_strided_slice %2 {offsets = [4, 0], sizes = [1, 128], strides = [1, 1]} : vector<5x128xf32> to vector<1x128xf32>
    %9 = vector.extract_strided_slice %3 {offsets = [0, 0], sizes = [1, 512], strides = [1, 1]} : vector<4x512xf32> to vector<1x512xf32>
    %10 = vector.extract_strided_slice %3 {offsets = [1, 0], sizes = [1, 512], strides = [1, 1]} : vector<4x512xf32> to vector<1x512xf32>
    %11 = vector.extract_strided_slice %3 {offsets = [2, 0], sizes = [1, 512], strides = [1, 1]} : vector<4x512xf32> to vector<1x512xf32>
    %12 = vector.extract_strided_slice %3 {offsets = [3, 0], sizes = [1, 512], strides = [1, 1]} : vector<4x512xf32> to vector<1x512xf32>
    %c0_7 = arith.constant 0 : index
    %c0_8 = arith.constant 0 : index
    %13 = vector.load %arg5[%c0_7, %c0_8] : memref<4x640xf32, #tpu.memory_space<vmem>>, vector<4x512xf32>
    %c0_9 = arith.constant 0 : index
    %c512 = arith.constant 512 : index
    %14 = vector.load %arg5[%c0_9, %c512] : memref<4x640xf32, #tpu.memory_space<vmem>>, vector<4x128xf32>
    %c0_10 = arith.constant 0 : index
    %c0_11 = arith.constant 0 : index
    %15 = vector.load %arg2[%c0_10, %c0_11] : memref<64x512xf32, #tpu.memory_space<vmem>>, vector<64x512xf32>
    %cst = arith.constant dense<0.000000e+00> : vector<64xf32>
    %16 = vector.multi_reduction <add>, %0, %cst [0] : vector<8x64xf32> to vector<64xf32>
    %17 = vector.shape_cast %16 : vector<64xf32> to vector<1x64xf32>
    %cst_12 = arith.constant 8.000000e+00 : f32
    %18 = vector.broadcast %cst_12 : f32 to vector<1x64xf32>
    %19 = arith.divf %17, %18 : vector<1x64xf32>
    %20 = arith.mulf %0, %0 : vector<8x64xf32>
    %cst_13 = arith.constant dense<0.000000e+00> : vector<64xf32>
    %21 = vector.multi_reduction <add>, %20, %cst_13 [0] : vector<8x64xf32> to vector<64xf32>
    %22 = vector.shape_cast %21 : vector<64xf32> to vector<1x64xf32>
    %cst_14 = arith.constant 8.000000e+00 : f32
    %23 = vector.broadcast %cst_14 : f32 to vector<1x64xf32>
    %24 = arith.divf %22, %23 : vector<1x64xf32>
    %25 = arith.mulf %19, %19 : vector<1x64xf32>
    %26 = arith.subf %24, %25 : vector<1x64xf32>
    %cst_15 = arith.constant 0.000000e+00 : f32
    %27 = vector.broadcast %cst_15 : f32 to vector<1x64xf32>
    %28 = arith.maximumf %26, %27 : vector<1x64xf32>
    %cst_16 = arith.constant 9.99999974E-6 : f32
    %29 = vector.broadcast %cst_16 : f32 to vector<1x64xf32>
    %30 = arith.addf %28, %29 : vector<1x64xf32>
    %31 = math.rsqrt %30 : vector<1x64xf32>
    %32 = arith.mulf %4, %31 : vector<1x64xf32>
    %33 = arith.mulf %19, %32 : vector<1x64xf32>
    %34 = arith.subf %5, %33 : vector<1x64xf32>
    %35 = vector.broadcast %32 : vector<1x64xf32> to vector<8x64xf32>
    %36 = arith.mulf %0, %35 : vector<8x64xf32>
    %cst_17 = arith.constant dense<0.000000e+00> : vector<8x512xf32>
    %37 = tpu.matmul %36, %15, %cst_17 {dimension_numbers = #tpu.dot_dimension_numbers<[1], [0], [0], [1], [0, 0, 1, 1], [], []>} : vector<8x64xf32>, vector<64x512xf32>, vector<8x512xf32> -> vector<8x512xf32>
    %cst_18 = arith.constant dense<0.000000e+00> : vector<1x512xf32>
    %38 = tpu.matmul %34, %15, %cst_18 {dimension_numbers = #tpu.dot_dimension_numbers<[1], [0], [0], [1], [0, 0, 1, 1], [], []>} : vector<1x64xf32>, vector<64x512xf32>, vector<1x512xf32> -> vector<1x512xf32>
    %39 = arith.addf %9, %38 : vector<1x512xf32>
    %40 = vector.broadcast %39 : vector<1x512xf32> to vector<8x512xf32>
    %41 = arith.addf %37, %40 : vector<8x512xf32>
    %cst_19 = arith.constant 0.00999999977 : f32
    %42 = vector.broadcast %cst_19 : f32 to vector<8x512xf32>
    %43 = arith.mulf %42, %41 : vector<8x512xf32>
    %44 = arith.maximumf %41, %43 : vector<8x512xf32>
    %cst_20 = arith.constant dense<0.000000e+00> : vector<512xf32>
    %45 = vector.multi_reduction <add>, %44, %cst_20 [0] : vector<8x512xf32> to vector<512xf32>
    %46 = vector.shape_cast %45 : vector<512xf32> to vector<1x512xf32>
    %cst_21 = arith.constant 8.000000e+00 : f32
    %47 = vector.broadcast %cst_21 : f32 to vector<1x512xf32>
    %48 = arith.divf %46, %47 : vector<1x512xf32>
    %49 = arith.mulf %44, %44 : vector<8x512xf32>
    %cst_22 = arith.constant dense<0.000000e+00> : vector<512xf32>
    %50 = vector.multi_reduction <add>, %49, %cst_22 [0] : vector<8x512xf32> to vector<512xf32>
    %51 = vector.shape_cast %50 : vector<512xf32> to vector<1x512xf32>
    %cst_23 = arith.constant 8.000000e+00 : f32
    %52 = vector.broadcast %cst_23 : f32 to vector<1x512xf32>
    %53 = arith.divf %51, %52 : vector<1x512xf32>
    %54 = arith.mulf %48, %48 : vector<1x512xf32>
    %55 = arith.subf %53, %54 : vector<1x512xf32>
    %cst_24 = arith.constant 0.000000e+00 : f32
    %56 = vector.broadcast %cst_24 : f32 to vector<1x512xf32>
    %57 = arith.maximumf %55, %56 : vector<1x512xf32>
    %cst_25 = arith.constant 9.99999974E-6 : f32
    %58 = vector.broadcast %cst_25 : f32 to vector<1x512xf32>
    %59 = arith.addf %57, %58 : vector<1x512xf32>
    %60 = math.rsqrt %59 : vector<1x512xf32>
    %61 = arith.mulf %10, %60 : vector<1x512xf32>
    %62 = arith.mulf %48, %61 : vector<1x512xf32>
    %63 = arith.subf %11, %62 : vector<1x512xf32>
    %cst_26 = arith.constant dense<0.000000e+00> : vector<4xf32>
    %64 = vector.multi_reduction <add>, %1, %cst_26 [0] : vector<8x4xf32> to vector<4xf32>
    %65 = vector.shape_cast %64 : vector<4xf32> to vector<1x4xf32>
    %cst_27 = arith.constant 8.000000e+00 : f32
    %66 = vector.broadcast %cst_27 : f32 to vector<1x4xf32>
    %67 = arith.divf %65, %66 : vector<1x4xf32>
    %68 = arith.mulf %1, %1 : vector<8x4xf32>
    %cst_28 = arith.constant dense<0.000000e+00> : vector<4xf32>
    %69 = vector.multi_reduction <add>, %68, %cst_28 [0] : vector<8x4xf32> to vector<4xf32>
    %70 = vector.shape_cast %69 : vector<4xf32> to vector<1x4xf32>
    %cst_29 = arith.constant 8.000000e+00 : f32
    %71 = vector.broadcast %cst_29 : f32 to vector<1x4xf32>
    %72 = arith.divf %70, %71 : vector<1x4xf32>
    %73 = arith.mulf %67, %67 : vector<1x4xf32>
    %74 = arith.subf %72, %73 : vector<1x4xf32>
    %cst_30 = arith.constant 0.000000e+00 : f32
    %75 = vector.broadcast %cst_30 : f32 to vector<1x4xf32>
    %76 = arith.maximumf %74, %75 : vector<1x4xf32>
    %cst_31 = arith.constant 9.99999974E-6 : f32
    %77 = vector.broadcast %cst_31 : f32 to vector<1x4xf32>
    %78 = arith.addf %76, %77 : vector<1x4xf32>
    %79 = math.rsqrt %78 : vector<1x4xf32>
    %80 = arith.mulf %6, %79 : vector<1x4xf32>
    %81 = arith.mulf %67, %80 : vector<1x4xf32>
    %82 = arith.subf %7, %81 : vector<1x4xf32>
    %c0_32 = arith.constant 0 : index
    %c0_33 = arith.constant 0 : index
    %83 = vector.load %arg3[%c0_32, %c0_33] : memref<512x512xbf16, #tpu.memory_space<vmem>>, vector<512x512xbf16>
    %84 = vector.broadcast %61 : vector<1x512xf32> to vector<8x512xf32>
    %85 = arith.mulf %44, %84 : vector<8x512xf32>
    %86 = arith.truncf %85 : vector<8x512xf32> to vector<8x512xbf16>
    %cst_34 = arith.constant dense<0.000000e+00> : vector<8x512xf32>
    %87 = tpu.matmul %86, %83, %cst_34 {dimension_numbers = #tpu.dot_dimension_numbers<[1], [0], [0], [1], [0, 0, 1, 1], [], []>} : vector<8x512xbf16>, vector<512x512xbf16>, vector<8x512xf32> -> vector<8x512xf32>
    %88 = vector.broadcast %80 : vector<1x4xf32> to vector<8x4xf32>
    %89 = arith.mulf %1, %88 : vector<8x4xf32>
    %cst_35 = arith.constant dense<0.000000e+00> : vector<8x512xf32>
    %90 = tpu.matmul %89, %13, %cst_35 {dimension_numbers = #tpu.dot_dimension_numbers<[1], [0], [0], [1], [0, 0, 1, 1], [], []>} : vector<8x4xf32>, vector<4x512xf32>, vector<8x512xf32> -> vector<8x512xf32>
    %91 = arith.addf %87, %90 : vector<8x512xf32>
    %92 = arith.truncf %63 : vector<1x512xf32> to vector<1x512xbf16>
    %cst_36 = arith.constant dense<0.000000e+00> : vector<1x512xf32>
    %93 = tpu.matmul %92, %83, %cst_36 {dimension_numbers = #tpu.dot_dimension_numbers<[1], [0], [0], [1], [0, 0, 1, 1], [], []>} : vector<1x512xbf16>, vector<512x512xbf16>, vector<1x512xf32> -> vector<1x512xf32>
    %94 = arith.addf %12, %93 : vector<1x512xf32>
    %cst_37 = arith.constant dense<0.000000e+00> : vector<1x512xf32>
    %95 = tpu.matmul %82, %13, %cst_37 {dimension_numbers = #tpu.dot_dimension_numbers<[1], [0], [0], [1], [0, 0, 1, 1], [], []>} : vector<1x4xf32>, vector<4x512xf32>, vector<1x512xf32> -> vector<1x512xf32>
    %96 = arith.addf %94, %95 : vector<1x512xf32>
    %97 = vector.broadcast %96 : vector<1x512xf32> to vector<8x512xf32>
    %98 = arith.addf %91, %97 : vector<8x512xf32>
    %cst_38 = arith.constant 0.00999999977 : f32
    %99 = vector.broadcast %cst_38 : f32 to vector<8x512xf32>
    %100 = arith.mulf %99, %98 : vector<8x512xf32>
    %101 = arith.maximumf %98, %100 : vector<8x512xf32>
    %c0_39 = arith.constant 0 : index
    %c0_40 = arith.constant 0 : index
    %102 = vector.load %arg4[%c0_39, %c0_40] : memref<512x128xf32, #tpu.memory_space<vmem>>, vector<512x128xf32>
    %cst_41 = arith.constant dense<0.000000e+00> : vector<8x128xf32>
    %103 = tpu.matmul %101, %102, %cst_41 {dimension_numbers = #tpu.dot_dimension_numbers<[1], [0], [0], [1], [0, 0, 1, 1], [], []>} : vector<8x512xf32>, vector<512x128xf32>, vector<8x128xf32> -> vector<8x128xf32>
    %cst_42 = arith.constant dense<0.000000e+00> : vector<8x128xf32>
    %104 = tpu.matmul %1, %14, %cst_42 {dimension_numbers = #tpu.dot_dimension_numbers<[1], [0], [0], [1], [0, 0, 1, 1], [], []>} : vector<8x4xf32>, vector<4x128xf32>, vector<8x128xf32> -> vector<8x128xf32>
    %105 = arith.addf %103, %104 : vector<8x128xf32>
    %106 = vector.broadcast %8 : vector<1x128xf32> to vector<8x128xf32>
    %107 = arith.addf %105, %106 : vector<8x128xf32>
    %c0_43 = arith.constant 0 : index
    %c0_44 = arith.constant 0 : index
    %108 = vector.load %arg8[%c0_43, %c0_44] : memref<8x128xf32, #tpu.memory_space<vmem>>, vector<8x128xf32>
    tpu.vector_store %arg8[%c0_43, %c0_44], %107 {strides = array<i32>} : memref<8x128xf32, #tpu.memory_space<vmem>>, vector<8x128xf32>,
    return
  }
}

</mosaic_0001>

<llo_original>
// kernel: pose_vae_encoder.1
$region0: #{pose_vae_encoder.1}
  #allocation0 [shape = 'u32[]', space=smem, size = 0x4, offset = 0x4, fixed_abs, tag = 'smem constant byte address 0x4 - core index']
  #allocation1 [shape = 'u32[144,128]{1,0:T(1,128)}', space=vmem, size = 0x12000, scoped, tag = 'internal scratch']
  %s0 = inlined_call_operand.vmem [shape: f32[8,64], index: 0, kind: input, shape index: {}]
  %s1 = inlined_call_operand.vmem [shape: f32[8,4], index: 1, kind: input, shape index: {}]
  %s2 = inlined_call_operand.hbm [shape: f32[64,512], index: 2, kind: input, shape index: {}]
  %s3 = inlined_call_operand.hbm [shape: bf16[512,512], index: 3, kind: input, shape index: {}]
  %s4 = inlined_call_operand.hbm [shape: f32[512,128], index: 4, kind: input, shape index: {}]
  %s5 = inlined_call_operand.vmem [shape: f32[4,640], index: 5, kind: input, shape index: {}]
  %s6 = inlined_call_operand.vmem [shape: f32[4,512], index: 6, kind: input, shape index: {}]
  %s7 = inlined_call_operand.vmem [shape: f32[5,128], index: 7, kind: input, shape index: {}]
  %s8 = inlined_call_operand.vmem [shape: f32[8,128], index: 8, kind: output, shape index: {}]
  %s9 = sld [smem:[#allocation0]]
  $region54: #{pose_vae_encoder.1} parent=0
    _
  %s11 = ssub.s32 1, %s9
  %s12 = scalar_select 0, %s11, %s9
  $region1: #{pose_vae_encoder.1} parent=0
    #allocation2 [shape = 'u8[131072]{0}', space=vmem, size = 0x20000, scoped, tag = 'input window, operand 2, single buffered']
    #allocation3 [shape = 's32[1]{0}', space=sflag, size = 0x4, scoped, tag = 'scoped memory for pose_vae_encoder.1']
    #allocation4 [shape = 'u8[524288]{0}', space=vmem, size = 0x80000, scoped, tag = 'input window, operand 3, single buffered']
    #allocation5 [shape = 's32[1]{0}', space=sflag, size = 0x4, scoped, tag = 'scoped memory for pose_vae_encoder.1']
    #allocation6 [shape = 'u8[262144]{0}', space=vmem, size = 0x40000, scoped, tag = 'input window, operand 4, single buffered']
    %13 = vsyncpa [#allocation3], 0
    %14 = vsyncpa [#allocation5], 0
    // Predicated region
    $region2: #{pose_vae_encoder.1} parent=1 // pred_check
      _
    $region3: #{pose_vae_encoder.1} parent=1 // pred_check_branch
      %16 = sbr.rel (0) target = $region5
    $region4: #{pose_vae_encoder.1} parent=1 // pred_region
      _
    $region5: #{pose_vae_encoder.1} parent=1 // pred_fallthru
      _
    // Predicated region
    $region6: #{pose_vae_encoder.1} parent=1 // pred_check
      _
    $region7: #{pose_vae_encoder.1} parent=1 // pred_check_branch
      %18 = sbr.rel (0) target = $region9
    $region8: #{pose_vae_encoder.1} parent=1 // pred_region
      _
    $region9: #{pose_vae_encoder.1} parent=1 // pred_fallthru
      _
    // Predicated region
    $region10: #{pose_vae_encoder.1} parent=1 // pred_check
      _
    $region11: #{pose_vae_encoder.1} parent=1 // pred_check_branch
      %20 = sbr.rel (0) target = $region13
    $region12: #{pose_vae_encoder.1} parent=1 // pred_region
      %s22 = ssub.s32 4096, 4096
      %23 = vsyncadd [#allocation3], %s22
      %s24 = sshll.u32 [#allocation2], 4
      %s25 = int_to_ptr.vmem [resolvable:$true] %s24
      %30 = dma.hbm_to_vmem [thread:$0]  %s2, 4096, %s25, [#allocation3], 512, 512, 32
    $region13: #{pose_vae_encoder.1} parent=1 // pred_fallthru
      _
    // Predicated region
    $region14: #{pose_vae_encoder.1} parent=1 // pred_check
      _
    $region15: #{pose_vae_encoder.1} parent=1 // pred_check_branch
      %32 = sbr.rel (0) target = $region17
    $region16: #{pose_vae_encoder.1} parent=1 // pred_region
      %s34 = ssub.s32 16384, 16384
      %35 = vsyncadd [#allocation5], %s34
      %s36 = sshll.u32 [#allocation4], 4
      %s37 = int_to_ptr.vmem [resolvable:$true] %s36
      %42 = dma.hbm_to_vmem [thread:$0]  %s3, 16384, %s37, [#allocation5], 256, 256, 16
    $region17: #{pose_vae_encoder.1} parent=1 // pred_fallthru
      _
    // Predicated region
    $region18: #{pose_vae_encoder.1} parent=1 // pred_check
      _
    $region19: #{pose_vae_encoder.1} parent=1 // pred_check_branch
      %44 = sbr.rel (0) target = $region21
    $region20: #{pose_vae_encoder.1} parent=1 // pred_region
      %s46 = ssub.s32 8192, 8192
      %47 = vsyncadd [#allocation5], %s46
      %s48 = sshll.u32 [#allocation6], 4
      %s49 = int_to_ptr.vmem [resolvable:$true] %s48
      %54 = dma.hbm_to_vmem [thread:$0]  %s4, 8192, %s49, [#allocation5], 128, 128, 8
    $region21: #{pose_vae_encoder.1} parent=1 // pred_fallthru
      _
    // Predicated region
    $region22: #{pose_vae_encoder.1} parent=1 // pred_check
      _
    $region23: #{pose_vae_encoder.1} parent=1 // pred_check_branch
      %56 = sbr.rel (0) target = $region25
    $region24: #{pose_vae_encoder.1} parent=1 // pred_region
      _
    $region25: #{pose_vae_encoder.1} parent=1 // pred_fallthru
      _
    // Predicated region
    $region26: #{pose_vae_encoder.1} parent=1 // pred_check
      _
    $region27: #{pose_vae_encoder.1} parent=1 // pred_check_branch
      %58 = sbr.rel (0) target = $region29
    $region28: #{pose_vae_encoder.1} parent=1 // pred_region
      _
    $region29: #{pose_vae_encoder.1} parent=1 // pred_fallthru
      _
    // Predicated region
    $region30: #{pose_vae_encoder.1} parent=1 // pred_check
      _
    $region31: #{pose_vae_encoder.1} parent=1 // pred_check_branch
      %60 = sbr.rel (0) target = $region33
    $region32: #{pose_vae_encoder.1} parent=1 // pred_region
      _
    $region33: #{pose_vae_encoder.1} parent=1 // pred_fallthru
      _
    // Predicated region
    $region34: #{pose_vae_encoder.1} parent=1 // pred_check
      _
    $region35: #{pose_vae_encoder.1} parent=1 // pred_check_branch
      %62 = sbr.rel (0) target = $region37
    $region36: #{pose_vae_encoder.1} parent=1 // pred_region
      %63 = dma.done [#allocation3], 4096
    $region37: #{pose_vae_encoder.1} parent=1 // pred_fallthru
      _
    // Predicated region
    $region38: #{pose_vae_encoder.1} parent=1 // pred_check
      _
    $region39: #{pose_vae_encoder.1} parent=1 // pred_check_branch
      %65 = sbr.rel (0) target = $region41
    $region40: #{pose_vae_encoder.1} parent=1 // pred_region
      %66 = dma.done [#allocation5], 16384
    $region41: #{pose_vae_encoder.1} parent=1 // pred_fallthru
      _
    // Predicated region
    $region42: #{pose_vae_encoder.1} parent=1 // pred_check
      _
    $region43: #{pose_vae_encoder.1} parent=1 // pred_check_branch
      %68 = sbr.rel (0) target = $region45
    $region44: #{pose_vae_encoder.1} parent=1 // pred_region
      %69 = dma.done [#allocation5], 8192
    $region45: #{pose_vae_encoder.1} parent=1 // pred_fallthru
      _
    %v70 = vld [vmem:[%s0] sm:$0xff]
    %v71 = vld [vmem:[%s1] sm:$0xff]
    %v72 = vld [vmem:[%s7] sm:$0x1f]
    %v73 = vld [vmem:[%s6] sm:$0xff]
    %v74 = vld [vmem:[%s6 + $0x8] sm:$0xff]
    %v75 = vld [vmem:[%s5] sm:$0xff]
    %v76 = vld [vmem:[%s5 + $0x8] sm:$0xff]
    %v77 = vld [vmem:[%s5 + $0x10] sm:$0xf]
    %v78 = vld [vmem:[#allocation2] sm:$0xff]
    %v79 = vld [vmem:[#allocation2 + $0x8] sm:$0xff]
    %v80 = vld [vmem:[#allocation2 + $0x10] sm:$0xff]
    %v81 = vld [vmem:[#allocation2 + $0x18] sm:$0xff]
    %v82 = vld [vmem:[#allocation2 + $0x20] sm:$0xff]
    %v83 = vld [vmem:[#allocation2 + $0x28] sm:$0xff]
    %v84 = vld [vmem:[#allocation2 + $0x30] sm:$0xff]
    %v85 = vld [vmem:[#allocation2 + $0x38] sm:$0xff]
    %v86 = vld [vmem:[#allocation2 + $0x40] sm:$0xff]
    %v87 = vld [vmem:[#allocation2 + $0x48] sm:$0xff]
    %v88 = vld [vmem:[#allocation2 + $0x50] sm:$0xff]
    %v89 = vld [vmem:[#allocation2 + $0x58] sm:$0xff]
    %v90 = vld [vmem:[#allocation2 + $0x60] sm:$0xff]
    %v91 = vld [vmem:[#allocation2 + $0x68] sm:$0xff]
    %v92 = vld [vmem:[#allocation2 + $0x70] sm:$0xff]
    %v93 = vld [vmem:[#allocation2 + $0x78] sm:$0xff]
    %v94 = vld [vmem:[#allocation2 + $0x80] sm:$0xff]
    %v95 = vld [vmem:[#allocation2 + $0x88] sm:$0xff]
    %v96 = vld [vmem:[#allocation2 + $0x90] sm:$0xff]
    %v97 = vld [vmem:[#allocation2 + $0x98] sm:$0xff]
    %v98 = vld [vmem:[#allocation2 + $0xa0] sm:$0xff]
    %v99 = vld [vmem:[#allocation2 + $0xa8] sm:$0xff]
    %v100 = vld [vmem:[#allocation2 + $0xb0] sm:$0xff]
    %v101 = vld [vmem:[#allocation2 + $0xb8] sm:$0xff]
    %v102 = vld [vmem:[#allocation2 + $0xc0] sm:$0xff]
    %v103 = vld [vmem:[#allocation2 + $0xc8] sm:$0xff]
    %v104 = vld [vmem:[#allocation2 + $0xd0] sm:$0xff]
    %v105 = vld [vmem:[#allocation2 + $0xd8] sm:$0xff]
    %v106 = vld [vmem:[#allocation2 + $0xe0] sm:$0xff]
    %v107 = vld [vmem:[#allocation2 + $0xe8] sm:$0xff]
    %v108 = vld [vmem:[#allocation2 + $0xf0] sm:$0xff]
    %v109 = vld [vmem:[#allocation2 + $0xf8] sm:$0xff]
    %vm110 = vcmask 523264
    %v111 = vsel %vm110, %v70, 0.0
    %v112 = vrot.slane %v111, 4
    %v113 = vadd.f32 %v111, %v112
    %v114 = vrot.slane %v113, 2
    %v115 = vadd.f32 %v113, %v114
    %v116 = vrot.slane %v115, 1
    %v117 = vadd.f32 %v115, %v116
    %v118 = vrcp.pop 8.0
    %v119 = vmul.f32 %v117, %v118
    %v120 = vmul.f32 %v70, %v70
    %v121 = vsel %vm110, %v120, 0.0
    %v122 = vrot.slane %v121, 4
    %v123 = vadd.f32 %v121, %v122
    %v124 = vrot.slane %v123, 2
    %v125 = vadd.f32 %v123, %v124
    %v126 = vrot.slane %v125, 1
    %v127 = vadd.f32 %v125, %v126
    %v128 = vmul.f32 %v127, %v118
    %v129 = vmul.f32 %v119, %v119
    %v130 = vsub.f32 %v128, %v129
    %v131 = vmax.f32 %v130, 0.0
    %v132 = vadd.f32 %v131, 1e-05
    %v133 = vrsqrt.pop %v132
    %v134 = vmul.f32 %v72, %v133
    %v135 = vmul.f32 %v119, %v134
    %v137 = vrot.slane %v135, 7
    %v139 = vsub.f32 %v72, %v137
    %v140 = vlaneseq
    %v141 = vshrl.u32 %v140, 7
    %v142 = vsub.s32 0, %v141
    %v143 = vrot.slane %v134, %v142
    %v144 = vmul.f32 %v70, %v143
    %v146 = vrot.slane %v139, 1
    %v147 = vsel %vm110, %v146, 0
    %149 = vmatprep.subr.mxu0 %v79
    %150 = vmatpush1.msra.mxu0 %v78
    %151 = vmatprep.subr.mxu0 %v83
    %152 = vmatpush1.msra.mxu0 %v82
    %153 = vmatprep.subr.mxu0 %v87
    %154 = vmatpush1.msra.mxu0 %v86
    %155 = vmatprep.subr.mxu0 %v91
    %156 = vmatpush1.msra.mxu0 %v90
    %157 = vmatprep.subr.mxu0 %v95
    %158 = vmatpush1.msra.mxu0 %v94
    %159 = vmatprep.subr.mxu0 %v99
    %160 = vmatpush1.msra.mxu0 %v98
    %161 = vmatprep.subr.mxu0 %v103
    %162 = vmatpush1.msra.mxu0 %v102
    %163 = vmatprep.subr.mxu0 %v107
    %164 = vmatpush1.msra.mxu0 %v106
    %165 = vmatprep.subr.mxu0 0.0
    %166 = vmatpush1.msra.mxu0 0.0
    %167 = vmatprep.subr.mxu0 0.0
    %168 = vmatpush1.msra.mxu0 0.0
    %169 = vmatprep.subr.mxu0 0.0
    %170 = vmatpush1.msra.mxu0 0.0
    %171 = vmatprep.subr.mxu0 0.0
    %172 = vmatpush1.msra.mxu0 0.0
    %173 = vmatprep.subr.mxu0 0.0
    %174 = vmatpush1.msra.mxu0 0.0
    %175 = vmatprep.subr.mxu0 0.0
    %176 = vmatpush1.msra.mxu0 0.0
    %177 = vmatprep.subr.mxu0 0.0
    %178 = vmatpush1.msra.mxu0 0.0
    %179 = vmatprep.subr.mxu0 0.0
    %180 = vmatpush1.msra.mxu0 0.0
    %181 = vmatprep.subr.mxu0 0.0
    %182 = vmatpush1.msra.mxu0 0.0
    %183 = vmatprep.subr.mxu0 0.0
    %184 = vmatpush1.msra.mxu0 0.0
    %185 = vmatprep.subr.mxu0 0.0
    %186 = vmatpush1.msra.mxu0 0.0
    %187 = vmatprep.subr.mxu0 0.0
    %188 = vmatpush1.msra.mxu0 0.0
    %189 = vmatprep.subr.mxu0 0.0
    %190 = vmatpush1.msra.mxu0 0.0
    %191 = vmatprep.subr.mxu0 0.0
    %192 = vmatpush1.msra.mxu0 0.0
    %193 = vmatprep.subr.mxu0 0.0
    %194 = vmatpush1.msra.mxu0 0.0
    %195 = vmatprep.subr.mxu0 0.0
    %196 = vmatpush1.msra.mxu0 0.0
    %197 = vmatprep.subr.mxu0 0.0
    %198 = vmatpush1.msra.mxu0 0.0
    %199 = vmatprep.subr.mxu0 0.0
    %200 = vmatpush1.msra.mxu0 0.0
    %201 = vmatprep.subr.mxu0 0.0
    %202 = vmatpush1.msra.mxu0 0.0
    %203 = vmatprep.subr.mxu0 0.0
    %204 = vmatpush1.msra.mxu0 0.0
    %205 = vmatprep.subr.mxu0 0.0
    %206 = vmatpush1.msra.mxu0 0.0
    %207 = vmatprep.subr.mxu0 0.0
    %208 = vmatpush1.msra.mxu0 0.0
    %209 = vmatprep.subr.mxu0 0.0
    %210 = vmatpush1.msra.mxu0 0.0
    %211 = vmatprep.subr.mxu0 0.0
    %212 = vmatpush1.msra.mxu0 0.0
    %213 = vmatprep.mubr.f32.mxu0 0.0
    %214 = vmatmul.mubr.f32.gmra.mrb[0].mxu0 %v147
    %v215 = vpop.f32.mrb[0].mxu0
    %v216 = vadd.f32 0.0, %v215
    %v217 = vpop.f32.mrb[0].mxu0
    %v218 = vadd.f32 0.0, %v217
    %219 = vdwg.mxu0
    %220 = vmatprep.subr.mxu0 %v81
    %221 = vmatpush1.msra.mxu0 %v80
    %222 = vmatprep.subr.mxu0 %v85
    %223 = vmatpush1.msra.mxu0 %v84
    %224 = vmatprep.subr.mxu0 %v89
    %225 = vmatpush1.msra.mxu0 %v88
    %226 = vmatprep.subr.mxu0 %v93
    %227 = vmatpush1.msra.mxu0 %v92
    %228 = vmatprep.subr.mxu0 %v97
    %229 = vmatpush1.msra.mxu0 %v96
    %230 = vmatprep.subr.mxu0 %v101
    %231 = vmatpush1.msra.mxu0 %v100
    %232 = vmatprep.subr.mxu0 %v105
    %233 = vmatpush1.msra.mxu0 %v104
    %234 = vmatprep.subr.mxu0 %v109
    %235 = vmatpush1.msra.mxu0 %v108
    %236 = vmatprep.subr.mxu0 0.0
    %237 = vmatpush1.msra.mxu0 0.0
    %238 = vmatprep.subr.mxu0 0.0
    %239 = vmatpush1.msra.mxu0 0.0
    %240 = vmatprep.subr.mxu0 0.0
    %241 = vmatpush1.msra.mxu0 0.0
    %242 = vmatprep.subr.mxu0 0.0
    %243 = vmatpush1.msra.mxu0 0.0
    %244 = vmatprep.subr.mxu0 0.0
    %245 = vmatpush1.msra.mxu0 0.0
    %246 = vmatprep.subr.mxu0 0.0
    %247 = vmatpush1.msra.mxu0 0.0
    %248 = vmatprep.subr.mxu0 0.0
    %249 = vmatpush1.msra.mxu0 0.0
    %250 = vmatprep.subr.mxu0 0.0
    %251 = vmatpush1.msra.mxu0 0.0
    %252 = vmatprep.subr.mxu0 0.0
    %253 = vmatpush1.msra.mxu0 0.0
    %254 = vmatprep.subr.mxu0 0.0
    %255 = vmatpush1.msra.mxu0 0.0
    %256 = vmatprep.subr.mxu0 0.0
    %257 = vmatpush1.msra.mxu0 0.0
    %258 = vmatprep.subr.mxu0 0.0
    %259 = vmatpush1.msra.mxu0 0.0
    %260 = vmatprep.subr.mxu0 0.0
    %261 = vmatpush1.msra.mxu0 0.0
    %262 = vmatprep.subr.mxu0 0.0
    %263 = vmatpush1.msra.mxu0 0.0
    %264 = vmatprep.subr.mxu0 0.0
    %265 = vmatpush1.msra.mxu0 0.0
    %266 = vmatprep.subr.mxu0 0.0
    %267 = vmatpush1.msra.mxu0 0.0
    %268 = vmatprep.subr.mxu0 0.0
    %269 = vmatpush1.msra.mxu0 0.0
    %270 = vmatprep.subr.mxu0 0.0
    %271 = vmatpush1.msra.mxu0 0.0
    %272 = vmatprep.subr.mxu0 0.0
    %273 = vmatpush1.msra.mxu0 0.0
    %274 = vmatprep.subr.mxu0 0.0
    %275 = vmatpush1.msra.mxu0 0.0
    %276 = vmatprep.subr.mxu0 0.0
    %277 = vmatpush1.msra.mxu0 0.0
    %278 = vmatprep.subr.mxu0 0.0
    %279 = vmatpush1.msra.mxu0 0.0
    %280 = vmatprep.subr.mxu0 0.0
    %281 = vmatpush1.msra.mxu0 0.0
    %282 = vmatprep.subr.mxu0 0.0
    %283 = vmatpush1.msra.mxu0 0.0
    %284 = vmatprep.mubr.f32.mxu0 0.0
    %285 = vmatmul.mubr.f32.gmra.mrb[0].mxu0 %v147
    %v286 = vpop.f32.mrb[0].mxu0
    %v287 = vadd.f32 0.0, %v286
    %v288 = vpop.f32.mrb[0].mxu0
    %v289 = vadd.f32 0.0, %v288
    %290 = vdwg.mxu0
    %v295 = vcombine.low %v216, %v218
    %v296 = vcombine.low %v287, %v289
    %v299 = vadd.f32 %v73, %v295
    %v300 = vadd.f32 %v74, %v296
    %v303 = vlaneseq
    %v304 = vshrl.u32 %v303, 7
    %v305 = vsub.s32 0, %v304
    %v306 = vrot.slane %v299, %v305
    %v307 = vlaneseq
    %v308 = vshrl.u32 %v307, 7
    %v309 = vsub.s32 4, %v308
    %v310 = vrot.slane %v299, %v309
    %v311 = vlaneseq
    %v312 = vshrl.u32 %v311, 7
    %v313 = vsub.s32 0, %v312
    %v314 = vrot.slane %v300, %v313
    %v315 = vlaneseq
    %v316 = vshrl.u32 %v315, 7
    %v317 = vsub.s32 4, %v316
    %v318 = vrot.slane %v300, %v317
    %v323 = vlaneseq
    %v324 = vshrl.u32 %v323, 7
    %v325 = vsub.s32 0, %v324
    %v326 = vrot.slane %v306, %v325
    %v327 = vlaneseq
    %v328 = vshrl.u32 %v327, 7
    %v329 = vsub.s32 0, %v328
    %v330 = vrot.slane %v310, %v329
    %v331 = vlaneseq
    %v332 = vshrl.u32 %v331, 7
    %v333 = vsub.s32 0, %v332
    %v334 = vrot.slane %v314, %v333
    %v335 = vlaneseq
    %v336 = vshrl.u32 %v335, 7
    %v337 = vsub.s32 0, %v336
    %v338 = vrot.slane %v318, %v337
    %v340 = vsel %vm110, %v144, 0
    %342 = vmatprep.subr.mxu0 %v79
    %343 = vmatpush1.msra.mxu0 %v78
    %344 = vmatprep.subr.mxu0 %v83
    %345 = vmatpush1.msra.mxu0 %v82
    %346 = vmatprep.subr.mxu0 %v87
    %347 = vmatpush1.msra.mxu0 %v86
    %348 = vmatprep.subr.mxu0 %v91
    %349 = vmatpush1.msra.mxu0 %v90
    %350 = vmatprep.subr.mxu0 %v95
    %351 = vmatpush1.msra.mxu0 %v94
    %352 = vmatprep.subr.mxu0 %v99
    %353 = vmatpush1.msra.mxu0 %v98
    %354 = vmatprep.subr.mxu0 %v103
    %355 = vmatpush1.msra.mxu0 %v102
    %356 = vmatprep.subr.mxu0 %v107
    %357 = vmatpush1.msra.mxu0 %v106
    %358 = vmatprep.subr.mxu0 0.0
    %359 = vmatpush1.msra.mxu0 0.0
    %360 = vmatprep.subr.mxu0 0.0
    %361 = vmatpush1.msra.mxu0 0.0
    %362 = vmatprep.subr.mxu0 0.0
    %363 = vmatpush1.msra.mxu0 0.0
    %364 = vmatprep.subr.mxu0 0.0
    %365 = vmatpush1.msra.mxu0 0.0
    %366 = vmatprep.subr.mxu0 0.0
    %367 = vmatpush1.msra.mxu0 0.0
    %368 = vmatprep.subr.mxu0 0.0
    %369 = vmatpush1.msra.mxu0 0.0
    %370 = vmatprep.subr.mxu0 0.0
    %371 = vmatpush1.msra.mxu0 0.0
    %372 = vmatprep.subr.mxu0 0.0
    %373 = vmatpush1.msra.mxu0 0.0
    %374 = vmatprep.subr.mxu0 0.0
    %375 = vmatpush1.msra.mxu0 0.0
    %376 = vmatprep.subr.mxu0 0.0
    %377 = vmatpush1.msra.mxu0 0.0
    %378 = vmatprep.subr.mxu0 0.0
    %379 = vmatpush1.msra.mxu0 0.0
    %380 = vmatprep.subr.mxu0 0.0
    %381 = vmatpush1.msra.mxu0 0.0
    %382 = vmatprep.subr.mxu0 0.0
    %383 = vmatpush1.msra.mxu0 0.0
    %384 = vmatprep.subr.mxu0 0.0
    %385 = vmatpush1.msra.mxu0 0.0
    %386 = vmatprep.subr.mxu0 0.0
    %387 = vmatpush1.msra.mxu0 0.0
    %388 = vmatprep.subr.mxu0 0.0
    %389 = vmatpush1.msra.mxu0 0.0
    %390 = vmatprep.subr.mxu0 0.0
    %391 = vmatpush1.msra.mxu0 0.0
    %392 = vmatprep.subr.mxu0 0.0
    %393 = vmatpush1.msra.mxu0 0.0
    %394 = vmatprep.subr.mxu0 0.0
    %395 = vmatpush1.msra.mxu0 0.0
    %396 = vmatprep.subr.mxu0 0.0
    %397 = vmatpush1.msra.mxu0 0.0
    %398 = vmatprep.subr.mxu0 0.0
    %399 = vmatpush1.msra.mxu0 0.0
    %400 = vmatprep.subr.mxu0 0.0
    %401 = vmatpush1.msra.mxu0 0.0
    %402 = vmatprep.subr.mxu0 0.0
    %403 = vmatpush1.msra.mxu0 0.0
    %404 = vmatprep.subr.mxu0 0.0
    %405 = vmatpush1.msra.mxu0 0.0
    %406 = vmatprep.mubr.f32.mxu0 0.0
    %407 = vmatmul.mubr.f32.gmra.mrb[0].mxu0 %v340
    %v408 = vpop.f32.mrb[0].mxu0
    %v409 = vadd.f32 %v326, %v408
    %v410 = vpop.f32.mrb[0].mxu0
    %v411 = vadd.f32 %v330, %v410
    %412 = vdwg.mxu0
    %413 = vmatprep.subr.mxu0 %v81
    %414 = vmatpush1.msra.mxu0 %v80
    %415 = vmatprep.subr.mxu0 %v85
    %416 = vmatpush1.msra.mxu0 %v84
    %417 = vmatprep.subr.mxu0 %v89
    %418 = vmatpush1.msra.mxu0 %v88
    %419 = vmatprep.subr.mxu0 %v93
    %420 = vmatpush1.msra.mxu0 %v92
    %421 = vmatprep.subr.mxu0 %v97
    %422 = vmatpush1.msra.mxu0 %v96
    %423 = vmatprep.subr.mxu0 %v101
    %424 = vmatpush1.msra.mxu0 %v100
    %425 = vmatprep.subr.mxu0 %v105
    %426 = vmatpush1.msra.mxu0 %v104
    %427 = vmatprep.subr.mxu0 %v109
    %428 = vmatpush1.msra.mxu0 %v108
    %429 = vmatprep.subr.mxu0 0.0
    %430 = vmatpush1.msra.mxu0 0.0
    %431 = vmatprep.subr.mxu0 0.0
    %432 = vmatpush1.msra.mxu0 0.0
    %433 = vmatprep.subr.mxu0 0.0
    %434 = vmatpush1.msra.mxu0 0.0
    %435 = vmatprep.subr.mxu0 0.0
    %436 = vmatpush1.msra.mxu0 0.0
    %437 = vmatprep.subr.mxu0 0.0
    %438 = vmatpush1.msra.mxu0 0.0
    %439 = vmatprep.subr.mxu0 0.0
    %440 = vmatpush1.msra.mxu0 0.0
    %441 = vmatprep.subr.mxu0 0.0
    %442 = vmatpush1.msra.mxu0 0.0
    %443 = vmatprep.subr.mxu0 0.0
    %444 = vmatpush1.msra.mxu0 0.0
    %445 = vmatprep.subr.mxu0 0.0
    %446 = vmatpush1.msra.mxu0 0.0
    %447 = vmatprep.subr.mxu0 0.0
    %448 = vmatpush1.msra.mxu0 0.0
    %449 = vmatprep.subr.mxu0 0.0
    %450 = vmatpush1.msra.mxu0 0.0
    %451 = vmatprep.subr.mxu0 0.0
    %452 = vmatpush1.msra.mxu0 0.0
    %453 = vmatprep.subr.mxu0 0.0
    %454 = vmatpush1.msra.mxu0 0.0
    %455 = vmatprep.subr.mxu0 0.0
    %456 = vmatpush1.msra.mxu0 0.0
    %457 = vmatprep.subr.mxu0 0.0
    %458 = vmatpush1.msra.mxu0 0.0
    %459 = vmatprep.subr.mxu0 0.0
    %460 = vmatpush1.msra.mxu0 0.0
    %461 = vmatprep.subr.mxu0 0.0
    %462 = vmatpush1.msra.mxu0 0.0
    %463 = vmatprep.subr.mxu0 0.0
    %464 = vmatpush1.msra.mxu0 0.0
    %465 = vmatprep.subr.mxu0 0.0
    %466 = vmatpush1.msra.mxu0 0.0
    %467 = vmatprep.subr.mxu0 0.0
    %468 = vmatpush1.msra.mxu0 0.0
    %469 = vmatprep.subr.mxu0 0.0
    %470 = vmatpush1.msra.mxu0 0.0
    %471 = vmatprep.subr.mxu0 0.0
    %472 = vmatpush1.msra.mxu0 0.0
    %473 = vmatprep.subr.mxu0 0.0
    %474 = vmatpush1.msra.mxu0 0.0
    %475 = vmatprep.subr.mxu0 0.0
    %476 = vmatpush1.msra.mxu0 0.0
    %477 = vmatprep.mubr.f32.mxu0 0.0
    %478 = vmatmul.mubr.f32.gmra.mrb[0].mxu0 %v340
    %v479 = vpop.f32.mrb[0].mxu0
    %v480 = vadd.f32 %v334, %v479
    %v481 = vpop.f32.mrb[0].mxu0
    %v482 = vadd.f32 %v338, %v481
    %483 = vdwg.mxu0
    %v484 = vmul.f32 %v409, 0.01
    %v485 = vmul.f32 %v411, 0.01
    %v486 = vmul.f32 %v480, 0.01
    %v487 = vmul.f32 %v482, 0.01
    %v488 = vmax.f32 %v409, %v484
    %v489 = vmax.f32 %v411, %v485
    %v490 = vmax.f32 %v480, %v486
    %v491 = vmax.f32 %v482, %v487
    %v492 = vrot.slane %v488, 4
    %v493 = vadd.f32 %v488, %v492
    %v494 = vrot.slane %v493, 2
    %v495 = vadd.f32 %v493, %v494
    %v496 = vrot.slane %v495, 1
    %v497 = vadd.f32 %v495, %v496
    %v498 = vrot.slane %v489, 4
    %v499 = vadd.f32 %v489, %v498
    %v500 = vrot.slane %v499, 2
    %v501 = vadd.f32 %v499, %v500
    %v502 = vrot.slane %v501, 1
    %v503 = vadd.f32 %v501, %v502
    %v504 = vrot.slane %v490, 4
    %v505 = vadd.f32 %v490, %v504
    %v506 = vrot.slane %v505, 2
    %v507 = vadd.f32 %v505, %v506
    %v508 = vrot.slane %v507, 1
    %v509 = vadd.f32 %v507, %v508
    %v510 = vrot.slane %v491, 4
    %v511 = vadd.f32 %v491, %v510
    %v512 = vrot.slane %v511, 2
    %v513 = vadd.f32 %v511, %v512
    %v514 = vrot.slane %v513, 1
    %v515 = vadd.f32 %v513, %v514
    %v516 = vmul.f32 %v497, %v118
    %v517 = vmul.f32 %v503, %v118
    %v518 = vmul.f32 %v509, %v118
    %v519 = vmul.f32 %v515, %v118
    %v520 = vmul.f32 %v488, %v488
    %v521 = vmul.f32 %v489, %v489
    %v522 = vmul.f32 %v490, %v490
    %v523 = vmul.f32 %v491, %v491
    %v524 = vrot.slane %v520, 4
    %v525 = vadd.f32 %v520, %v524
    %v526 = vrot.slane %v525, 2
    %v527 = vadd.f32 %v525, %v526
    %v528 = vrot.slane %v527, 1
    %v529 = vadd.f32 %v527, %v528
    %v530 = vrot.slane %v521, 4
    %v531 = vadd.f32 %v521, %v530
    %v532 = vrot.slane %v531, 2
    %v533 = vadd.f32 %v531, %v532
    %v534 = vrot.slane %v533, 1
    %v535 = vadd.f32 %v533, %v534
    %v536 = vrot.slane %v522, 4
    %v537 = vadd.f32 %v522, %v536
    %v538 = vrot.slane %v537, 2
    %v539 = vadd.f32 %v537, %v538
    %v540 = vrot.slane %v539, 1
    %v541 = vadd.f32 %v539, %v540
    %v542 = vrot.slane %v523, 4
    %v543 = vadd.f32 %v523, %v542
    %v544 = vrot.slane %v543, 2
    %v545 = vadd.f32 %v543, %v544
    %v546 = vrot.slane %v545, 1
    %v547 = vadd.f32 %v545, %v546
    %v548 = vmul.f32 %v529, %v118
    %v549 = vmul.f32 %v535, %v118
    %v550 = vmul.f32 %v541, %v118
    %v551 = vmul.f32 %v547, %v118
    %v552 = vmul.f32 %v516, %v516
    %v553 = vmul.f32 %v517, %v517
    %v554 = vmul.f32 %v518, %v518
    %v555 = vmul.f32 %v519, %v519
    %v556 = vsub.f32 %v548, %v552
    %v557 = vsub.f32 %v549, %v553
    %v558 = vsub.f32 %v550, %v554
    %v559 = vsub.f32 %v551, %v555
    %v560 = vmax.f32 %v556, 0.0
    %v561 = vmax.f32 %v557, 0.0
    %v562 = vmax.f32 %v558, 0.0
    %v563 = vmax.f32 %v559, 0.0
    %v564 = vadd.f32 %v560, 1e-05
    %v565 = vadd.f32 %v561, 1e-05
    %v566 = vadd.f32 %v562, 1e-05
    %v567 = vadd.f32 %v563, 1e-05
    %v568 = vrsqrt.pop %v564
    %v569 = vrsqrt.pop %v565
    %v570 = vrsqrt.pop %v566
    %v571 = vrsqrt.pop %v567
    %v576 = vcombine.low %v568, %v569
    %v577 = vcombine.low %v570, %v571
    %v578 = vrot.slane %v576, 7
    %v579 = vrot.slane %v577, 7
    %v582 = vmul.f32 %v73, %v578
    %v583 = vmul.f32 %v74, %v579
    %v586 = vlaneseq
    %v587 = vshrl.u32 %v586, 7
    %v588 = vsub.s32 1, %v587
    %v589 = vrot.slane %v582, %v588
    %v590 = vlaneseq
    %v591 = vshrl.u32 %v590, 7
    %v592 = vsub.s32 5, %v591
    %v593 = vrot.slane %v582, %v592
    %v594 = vlaneseq
    %v595 = vshrl.u32 %v594, 7
    %v596 = vsub.s32 1, %v595
    %v597 = vrot.slane %v583, %v596
    %v598 = vlaneseq
    %v599 = vshrl.u32 %v598, 7
    %v600 = vsub.s32 5, %v599
    %v601 = vrot.slane %v583, %v600
    %v606 = vmul.f32 %v516, %v589
    %v607 = vmul.f32 %v517, %v593
    %v608 = vmul.f32 %v518, %v597
    %v609 = vmul.f32 %v519, %v601
    %v614 = vcombine.low %v606, %v607
    %v615 = vcombine.low %v608, %v609
    %v616 = vrot.slane %v614, 6
    %v617 = vrot.slane %v615, 6
    %v620 = vsub.f32 %v73, %v616
    %v621 = vsub.f32 %v74, %v617
    %vm622 = vcmask 31744
    %v623 = vsel %vm622, %v71, 0.0
    %v624 = vrot.slane %v623, 4
    %v625 = vadd.f32 %v623, %v624
    %v626 = vrot.slane %v625, 2
    %v627 = vadd.f32 %v625, %v626
    %v628 = vrot.slane %v627, 1
    %v629 = vadd.f32 %v627, %v628
    %v630 = vmul.f32 %v629, %v118
    %v631 = vmul.f32 %v71, %v71
    %v632 = vsel %vm622, %v631, 0.0
    %v633 = vrot.slane %v632, 4
    %v634 = vadd.f32 %v632, %v633
    %v635 = vrot.slane %v634, 2
    %v636 = vadd.f32 %v634, %v635
    %v637 = vrot.slane %v636, 1
    %v638 = vadd.f32 %v636, %v637
    %v639 = vmul.f32 %v638, %v118
    %v640 = vmul.f32 %v630, %v630
    %v641 = vsub.f32 %v639, %v640
    %v642 = vmax.f32 %v641, 0.0
    %v643 = vadd.f32 %v642, 1e-05
    %v644 = vrsqrt.pop %v643
    %v645 = vmul.f32 %v72, %v644
    %v646 = vmul.f32 %v630, %v645
    %v648 = vrot.slane %v646, 7
    %v650 = vsub.f32 %v72, %v648
    %v651 = vld [vmem:[#allocation4] sm:$0xff]
    %v652 = vld [vmem:[#allocation4 + $0x8] sm:$0xff]
    %v653 = vld [vmem:[#allocation4 + $0x10] sm:$0xff]
    %v654 = vld [vmem:[#allocation4 + $0x18] sm:$0xff]
    %v655 = vld [vmem:[#allocation4 + $0x20] sm:$0xff]
    %v656 = vld [vmem:[#allocation4 + $0x28] sm:$0xff]
    %v657 = vld [vmem:[#allocation4 + $0x30] sm:$0xff]
    %v658 = vld [vmem:[#allocation4 + $0x38] sm:$0xff]
    %v659 = vld [vmem:[#allocation4 + $0x40] sm:$0xff]
    %v660 = vld [vmem:[#allocation4 + $0x48] sm:$0xff]
    %v661 = vld [vmem:[#allocation4 + $0x50] sm:$0xff]
    %v662 = vld [vmem:[#allocation4 + $0x58] sm:$0xff]
    %v663 = vld [vmem:[#allocation4 + $0x60] sm:$0xff]
    %v664 = vld [vmem:[#allocation4 + $0x68] sm:$0xff]
    %v665 = vld [vmem:[#allocation4 + $0x70] sm:$0xff]
    %v666 = vld [vmem:[#allocation4 + $0x78] sm:$0xff]
    %v667 = vld [vmem:[#allocation4 + $0x80] sm:$0xff]
    %v668 = vld [vmem:[#allocation4 + $0x88] sm:$0xff]
    %v669 = vld [vmem:[#allocation4 + $0x90] sm:$0xff]
    %v670 = vld [vmem:[#allocation4 + $0x98] sm:$0xff]
    %v671 = vld [vmem:[#allocation4 + $0xa0] sm:$0xff]
    %v672 = vld [vmem:[#allocation4 + $0xa8] sm:$0xff]
    %v673 = vld [vmem:[#allocation4 + $0xb0] sm:$0xff]
    %v674 = vld [vmem:[#allocation4 + $0xb8] sm:$0xff]
    %v675 = vld [vmem:[#allocation4 + $0xc0] sm:$0xff]
    %v676 = vld [vmem:[#allocation4 + $0xc8] sm:$0xff]
    %v677 = vld [vmem:[#allocation4 + $0xd0] sm:$0xff]
    %v678 = vld [vmem:[#allocation4 + $0xd8] sm:$0xff]
    %v679 = vld [vmem:[#allocation4 + $0xe0] sm:$0xff]
    %v680 = vld [vmem:[#allocation4 + $0xe8] sm:$0xff]
    %v681 = vld [vmem:[#allocation4 + $0xf0] sm:$0xff]
    %v682 = vld [vmem:[#allocation4 + $0xf8] sm:$0xff]
    %v683 = vld [vmem:[#allocation4 + $0x100] sm:$0xff]
    %v684 = vld [vmem:[#allocation4 + $0x108] sm:$0xff]
    %v685 = vld [vmem:[#allocation4 + $0x110] sm:$0xff]
    %v686 = vld [vmem:[#allocation4 + $0x118] sm:$0xff]
    %v687 = vld [vmem:[#allocation4 + $0x120] sm:$0xff]
    %v688 = vld [vmem:[#allocation4 + $0x128] sm:$0xff]
    %v689 = vld [vmem:[#allocation4 + $0x130] sm:$0xff]
    %v690 = vld [vmem:[#allocation4 + $0x138] sm:$0xff]
    %v691 = vld [vmem:[#allocation4 + $0x140] sm:$0xff]
    %v692 = vld [vmem:[#allocation4 + $0x148] sm:$0xff]
    %v693 = vld [vmem:[#allocation4 + $0x150] sm:$0xff]
    %v694 = vld [vmem:[#allocation4 + $0x158] sm:$0xff]
    %v695 = vld [vmem:[#allocation4 + $0x160] sm:$0xff]
    %v696 = vld [vmem:[#allocation4 + $0x168] sm:$0xff]
    %v697 = vld [vmem:[#allocation4 + $0x170] sm:$0xff]
    %v698 = vld [vmem:[#allocation4 + $0x178] sm:$0xff]
    %v699 = vld [vmem:[#allocation4 + $0x180] sm:$0xff]
    %v700 = vld [vmem:[#allocation4 + $0x188] sm:$0xff]
    %v701 = vld [vmem:[#allocation4 + $0x190] sm:$0xff]
    %v702 = vld [vmem:[#allocation4 + $0x198] sm:$0xff]
    %v703 = vld [vmem:[#allocation4 + $0x1a0] sm:$0xff]
    %v704 = vld [vmem:[#allocation4 + $0x1a8] sm:$0xff]
    %v705 = vld [vmem:[#allocation4 + $0x1b0] sm:$0xff]
    %v706 = vld [vmem:[#allocation4 + $0x1b8] sm:$0xff]
    %v707 = vld [vmem:[#allocation4 + $0x1c0] sm:$0xff]
    %v708 = vld [vmem:[#allocation4 + $0x1c8] sm:$0xff]
    %v709 = vld [vmem:[#allocation4 + $0x1d0] sm:$0xff]
    %v710 = vld [vmem:[#allocation4 + $0x1d8] sm:$0xff]
    %v711 = vld [vmem:[#allocation4 + $0x1e0] sm:$0xff]
    %v712 = vld [vmem:[#allocation4 + $0x1e8] sm:$0xff]
    %v713 = vld [vmem:[#allocation4 + $0x1f0] sm:$0xff]
    %v714 = vld [vmem:[#allocation4 + $0x1f8] sm:$0xff]
    %v715 = vld [vmem:[#allocation4 + $0x200] sm:$0xff]
    %v716 = vld [vmem:[#allocation4 + $0x208] sm:$0xff]
    %v717 = vld [vmem:[#allocation4 + $0x210] sm:$0xff]
    %v718 = vld [vmem:[#allocation4 + $0x218] sm:$0xff]
    %v719 = vld [vmem:[#allocation4 + $0x220] sm:$0xff]
    %v720 = vld [vmem:[#allocation4 + $0x228] sm:$0xff]
    %v721 = vld [vmem:[#allocation4 + $0x230] sm:$0xff]
    %v722 = vld [vmem:[#allocation4 + $0x238] sm:$0xff]
    %v723 = vld [vmem:[#allocation4 + $0x240] sm:$0xff]
    %v724 = vld [vmem:[#allocation4 + $0x248] sm:$0xff]
    %v725 = vld [vmem:[#allocation4 + $0x250] sm:$0xff]
    %v726 = vld [vmem:[#allocation4 + $0x258] sm:$0xff]
    %v727 = vld [vmem:[#allocation4 + $0x260] sm:$0xff]
    %v728 = vld [vmem:[#allocation4 + $0x268] sm:$0xff]
    %v729 = vld [vmem:[#allocation4 + $0x270] sm:$0xff]
    %v730 = vld [vmem:[#allocation4 + $0x278] sm:$0xff]
    %v731 = vld [vmem:[#allocation4 + $0x280] sm:$0xff]
    %v732 = vld [vmem:[#allocation4 + $0x288] sm:$0xff]
    %v733 = vld [vmem:[#allocation4 + $0x290] sm:$0xff]
    %v734 = vld [vmem:[#allocation4 + $0x298] sm:$0xff]
    %v735 = vld [vmem:[#allocation4 + $0x2a0] sm:$0xff]
    %v736 = vld [vmem:[#allocation4 + $0x2a8] sm:$0xff]
    %v737 = vld [vmem:[#allocation4 + $0x2b0] sm:$0xff]
    %v738 = vld [vmem:[#allocation4 + $0x2b8] sm:$0xff]
    %v739 = vld [vmem:[#allocation4 + $0x2c0] sm:$0xff]
    %v740 = vld [vmem:[#allocation4 + $0x2c8] sm:$0xff]
    %v741 = vld [vmem:[#allocation4 + $0x2d0] sm:$0xff]
    %v742 = vld [vmem:[#allocation4 + $0x2d8] sm:$0xff]
    %v743 = vld [vmem:[#allocation4 + $0x2e0] sm:$0xff]
    %v744 = vld [vmem:[#allocation4 + $0x2e8] sm:$0xff]
    %v745 = vld [vmem:[#allocation4 + $0x2f0] sm:$0xff]
    %v746 = vld [vmem:[#allocation4 + $0x2f8] sm:$0xff]
    %v747 = vld [vmem:[#allocation4 + $0x300] sm:$0xff]
    %v748 = vld [vmem:[#allocation4 + $0x308] sm:$0xff]
    %v749 = vld [vmem:[#allocation4 + $0x310] sm:$0xff]
    %v750 = vld [vmem:[#allocation4 + $0x318] sm:$0xff]
    %v751 = vld [vmem:[#allocation4 + $0x320] sm:$0xff]
    %v752 = vld [vmem:[#allocation4 + $0x328] sm:$0xff]
    %v753 = vld [vmem:[#allocation4 + $0x330] sm:$0xff]
    %v754 = vld [vmem:[#allocation4 + $0x338] sm:$0xff]
    %v755 = vld [vmem:[#allocation4 + $0x340] sm:$0xff]
    %v756 = vld [vmem:[#allocation4 + $0x348] sm:$0xff]
    %v757 = vld [vmem:[#allocation4 + $0x350] sm:$0xff]
    %v758 = vld [vmem:[#allocation4 + $0x358] sm:$0xff]
    %v759 = vld [vmem:[#allocation4 + $0x360] sm:$0xff]
    %v760 = vld [vmem:[#allocation4 + $0x368] sm:$0xff]
    %v761 = vld [vmem:[#allocation4 + $0x370] sm:$0xff]
    %v762 = vld [vmem:[#allocation4 + $0x378] sm:$0xff]
    %v763 = vld [vmem:[#allocation4 + $0x380] sm:$0xff]
    %v764 = vld [vmem:[#allocation4 + $0x388] sm:$0xff]
    %v765 = vld [vmem:[#allocation4 + $0x390] sm:$0xff]
    %v766 = vld [vmem:[#allocation4 + $0x398] sm:$0xff]
    %v767 = vld [vmem:[#allocation4 + $0x3a0] sm:$0xff]
    %v768 = vld [vmem:[#allocation4 + $0x3a8] sm:$0xff]
    %v769 = vld [vmem:[#allocation4 + $0x3b0] sm:$0xff]
    %v770 = vld [vmem:[#allocation4 + $0x3b8] sm:$0xff]
    %v771 = vld [vmem:[#allocation4 + $0x3c0] sm:$0xff]
    %v772 = vld [vmem:[#allocation4 + $0x3c8] sm:$0xff]
    %v773 = vld [vmem:[#allocation4 + $0x3d0] sm:$0xff]
    %v774 = vld [vmem:[#allocation4 + $0x3d8] sm:$0xff]
    %v775 = vld [vmem:[#allocation4 + $0x3e0] sm:$0xff]
    %v776 = vld [vmem:[#allocation4 + $0x3e8] sm:$0xff]
    %v777 = vld [vmem:[#allocation4 + $0x3f0] sm:$0xff]
    %v778 = vld [vmem:[#allocation4 + $0x3f8] sm:$0xff]
    %v779 = vlaneseq
    %v780 = vshrl.u32 %v779, 7
    %v781 = vsub.s32 1, %v780
    %v782 = vrot.slane %v589, %v781
    %v783 = vlaneseq
    %v784 = vshrl.u32 %v783, 7
    %v785 = vsub.s32 1, %v784
    %v786 = vrot.slane %v593, %v785
    %v787 = vlaneseq
    %v788 = vshrl.u32 %v787, 7
    %v789 = vsub.s32 1, %v788
    %v790 = vrot.slane %v597, %v789
    %v791 = vlaneseq
    %v792 = vshrl.u32 %v791, 7
    %v793 = vsub.s32 1, %v792
    %v794 = vrot.slane %v601, %v793
    %v795 = vmul.f32 %v488, %v782
    %v796 = vmul.f32 %v489, %v786
    %v797 = vmul.f32 %v490, %v790
    %v798 = vmul.f32 %v491, %v794
    %v799 = vpack.c.bf16 %v795, %v795
    %v800 = vpack.c.bf16 %v796, %v796
    %v801 = vpack.c.bf16 %v797, %v797
    %v802 = vpack.c.bf16 %v798, %v798
    %v803 = vlaneseq
    %v804 = vshrl.u32 %v803, 7
    %v805 = vsub.s32 2, %v804
    %v806 = vrot.slane %v645, %v805
    %v807 = vmul.f32 %v71, %v806
    %v810 = vcombine.high %v75, %v75
    %v811 = vcombine.high %v76, %v76
    %v813 = vsel %vm622, %v807, 0
    %vm815 = vcmask 1043456
    %v816 = vsel %vm815, %v75, 0
    %v818 = vsel %vm815, %v810, 0
    %v820 = vsel %vm815, %v76, 0
    %v822 = vsel %vm815, %v811, 0
    %824 = vmatprep.subr.mxu0 %v818
    %825 = vmatpush1.msra.mxu0 %v816
    %826 = vmatprep.subr.mxu0 0.0
    %827 = vmatpush1.msra.mxu0 0.0
    %828 = vmatprep.subr.mxu0 0.0
    %829 = vmatpush1.msra.mxu0 0.0
    %830 = vmatprep.subr.mxu0 0.0
    %831 = vmatpush1.msra.mxu0 0.0
    %832 = vmatprep.subr.mxu0 0.0
    %833 = vmatpush1.msra.mxu0 0.0
    %834 = vmatprep.subr.mxu0 0.0
    %835 = vmatpush1.msra.mxu0 0.0
    %836 = vmatprep.subr.mxu0 0.0
    %837 = vmatpush1.msra.mxu0 0.0
    %838 = vmatprep.subr.mxu0 0.0
    %839 = vmatpush1.msra.mxu0 0.0
    %840 = vmatprep.subr.mxu0 0.0
    %841 = vmatpush1.msra.mxu0 0.0
    %842 = vmatprep.subr.mxu0 0.0
    %843 = vmatpush1.msra.mxu0 0.0
    %844 = vmatprep.subr.mxu0 0.0
    %845 = vmatpush1.msra.mxu0 0.0
    %846 = vmatprep.subr.mxu0 0.0
    %847 = vmatpush1.msra.mxu0 0.0
    %848 = vmatprep.subr.mxu0 0.0
    %849 = vmatpush1.msra.mxu0 0.0
    %850 = vmatprep.subr.mxu0 0.0
    %851 = vmatpush1.msra.mxu0 0.0
    %852 = vmatprep.subr.mxu0 0.0
    %853 = vmatpush1.msra.mxu0 0.0
    %854 = vmatprep.subr.mxu0 0.0
    %855 = vmatpush1.msra.mxu0 0.0
    %856 = vmatprep.subr.mxu0 0.0
    %857 = vmatpush1.msra.mxu0 0.0
    %858 = vmatprep.subr.mxu0 0.0
    %859 = vmatpush1.msra.mxu0 0.0
    %860 = vmatprep.subr.mxu0 0.0
    %861 = vmatpush1.msra.mxu0 0.0
    %862 = vmatprep.subr.mxu0 0.0
    %863 = vmatpush1.msra.mxu0 0.0
    %864 = vmatprep.subr.mxu0 0.0
    %865 = vmatpush1.msra.mxu0 0.0
    %866 = vmatprep.subr.mxu0 0.0
    %867 = vmatpush1.msra.mxu0 0.0
    %868 = vmatprep.subr.mxu0 0.0
    %869 = vmatpush1.msra.mxu0 0.0
    %870 = vmatprep.subr.mxu0 0.0
    %871 = vmatpush1.msra.mxu0 0.0
    %872 = vmatprep.subr.mxu0 0.0
    %873 = vmatpush1.msra.mxu0 0.0
    %874 = vmatprep.subr.mxu0 0.0
    %875 = vmatpush1.msra.mxu0 0.0
    %876 = vmatprep.subr.mxu0 0.0
    %877 = vmatpush1.msra.mxu0 0.0
    %878 = vmatprep.subr.mxu0 0.0
    %879 = vmatpush1.msra.mxu0 0.0
    %880 = vmatprep.subr.mxu0 0.0
    %881 = vmatpush1.msra.mxu0 0.0
    %882 = vmatprep.subr.mxu0 0.0
    %883 = vmatpush1.msra.mxu0 0.0
    %884 = vmatprep.subr.mxu0 0.0
    %885 = vmatpush1.msra.mxu0 0.0
    %886 = vmatprep.subr.mxu0 0.0
    %887 = vmatpush1.msra.mxu0 0.0
    %888 = vmatprep.mubr.f32.mxu0 0.0
    %889 = vmatmul.mubr.f32.gmra.mrb[0].mxu0 %v813
    %v890 = vpop.f32.mrb[0].mxu0
    %v891 = vadd.f32 0.0, %v890
    %v892 = vpop.f32.mrb[0].mxu0
    %v893 = vadd.f32 0.0, %v892
    %894 = vdwg.mxu0
    %895 = vmatprep.subr.mxu0 %v822
    %896 = vmatpush1.msra.mxu0 %v820
    %897 = vmatprep.subr.mxu0 0.0
    %898 = vmatpush1.msra.mxu0 0.0
    %899 = vmatprep.subr.mxu0 0.0
    %900 = vmatpush1.msra.mxu0 0.0
    %901 = vmatprep.subr.mxu0 0.0
    %902 = vmatpush1.msra.mxu0 0.0
    %903 = vmatprep.subr.mxu0 0.0
    %904 = vmatpush1.msra.mxu0 0.0
    %905 = vmatprep.subr.mxu0 0.0
    %906 = vmatpush1.msra.mxu0 0.0
    %907 = vmatprep.subr.mxu0 0.0
    %908 = vmatpush1.msra.mxu0 0.0
    %909 = vmatprep.subr.mxu0 0.0
    %910 = vmatpush1.msra.mxu0 0.0
    %911 = vmatprep.subr.mxu0 0.0
    %912 = vmatpush1.msra.mxu0 0.0
    %913 = vmatprep.subr.mxu0 0.0
    %914 = vmatpush1.msra.mxu0 0.0
    %915 = vmatprep.subr.mxu0 0.0
    %916 = vmatpush1.msra.mxu0 0.0
    %917 = vmatprep.subr.mxu0 0.0
    %918 = vmatpush1.msra.mxu0 0.0
    %919 = vmatprep.subr.mxu0 0.0
    %920 = vmatpush1.msra.mxu0 0.0
    %921 = vmatprep.subr.mxu0 0.0
    %922 = vmatpush1.msra.mxu0 0.0
    %923 = vmatprep.subr.mxu0 0.0
    %924 = vmatpush1.msra.mxu0 0.0
    %925 = vmatprep.subr.mxu0 0.0
    %926 = vmatpush1.msra.mxu0 0.0
    %927 = vmatprep.subr.mxu0 0.0
    %928 = vmatpush1.msra.mxu0 0.0
    %929 = vmatprep.subr.mxu0 0.0
    %930 = vmatpush1.msra.mxu0 0.0
    %931 = vmatprep.subr.mxu0 0.0
    %932 = vmatpush1.msra.mxu0 0.0
    %933 = vmatprep.subr.mxu0 0.0
    %934 = vmatpush1.msra.mxu0 0.0
    %935 = vmatprep.subr.mxu0 0.0
    %936 = vmatpush1.msra.mxu0 0.0
    %937 = vmatprep.subr.mxu0 0.0
    %938 = vmatpush1.msra.mxu0 0.0
    %939 = vmatprep.subr.mxu0 0.0
    %940 = vmatpush1.msra.mxu0 0.0
    %941 = vmatprep.subr.mxu0 0.0
    %942 = vmatpush1.msra.mxu0 0.0
    %943 = vmatprep.subr.mxu0 0.0
    %944 = vmatpush1.msra.mxu0 0.0
    %945 = vmatprep.subr.mxu0 0.0
    %946 = vmatpush1.msra.mxu0 0.0
    %947 = vmatprep.subr.mxu0 0.0
    %948 = vmatpush1.msra.mxu0 0.0
    %949 = vmatprep.subr.mxu0 0.0
    %950 = vmatpush1.msra.mxu0 0.0
    %951 = vmatprep.subr.mxu0 0.0
    %952 = vmatpush1.msra.mxu0 0.0
    %953 = vmatprep.subr.mxu0 0.0
    %954 = vmatpush1.msra.mxu0 0.0
    %955 = vmatprep.subr.mxu0 0.0
    %956 = vmatpush1.msra.mxu0 0.0
    %957 = vmatprep.subr.mxu0 0.0
    %958 = vmatpush1.msra.mxu0 0.0
    %959 = vmatprep.mubr.f32.mxu0 0.0
    %960 = vmatmul.mubr.f32.gmra.mrb[0].mxu0 %v813
    %v961 = vpop.f32.mrb[0].mxu0
    %v962 = vadd.f32 0.0, %v961
    %v963 = vpop.f32.mrb[0].mxu0
    %v964 = vadd.f32 0.0, %v963
    %965 = vdwg.mxu0
    %v1094 = vunpack.c.l.b16 %v651
    %v1095 = vunpack.c.h.b16 %v651
    %v1096 = vunpack.c.l.b16 %v652
    %v1097 = vunpack.c.h.b16 %v652
    %v1098 = vunpack.c.l.b16 %v653
    %v1099 = vunpack.c.h.b16 %v653
    %v1100 = vunpack.c.l.b16 %v654
    %v1101 = vunpack.c.h.b16 %v654
    %v1102 = vunpack.c.l.b16 %v655
    %v1103 = vunpack.c.h.b16 %v655
    %v1104 = vunpack.c.l.b16 %v656
    %v1105 = vunpack.c.h.b16 %v656
    %v1106 = vunpack.c.l.b16 %v657
    %v1107 = vunpack.c.h.b16 %v657
    %v1108 = vunpack.c.l.b16 %v658
    %v1109 = vunpack.c.h.b16 %v658
    %v1110 = vunpack.c.l.b16 %v659
    %v1111 = vunpack.c.h.b16 %v659
    %v1112 = vunpack.c.l.b16 %v660
    %v1113 = vunpack.c.h.b16 %v660
    %v1114 = vunpack.c.l.b16 %v661
    %v1115 = vunpack.c.h.b16 %v661
    %v1116 = vunpack.c.l.b16 %v662
    %v1117 = vunpack.c.h.b16 %v662
    %v1118 = vunpack.c.l.b16 %v663
    %v1119 = vunpack.c.h.b16 %v663
    %v1120 = vunpack.c.l.b16 %v664
    %v1121 = vunpack.c.h.b16 %v664
    %v1122 = vunpack.c.l.b16 %v665
    %v1123 = vunpack.c.h.b16 %v665
    %v1124 = vunpack.c.l.b16 %v666
    %v1125 = vunpack.c.h.b16 %v666
    %v1126 = vunpack.c.l.b16 %v667
    %v1127 = vunpack.c.h.b16 %v667
    %v1128 = vunpack.c.l.b16 %v668
    %v1129 = vunpack.c.h.b16 %v668
    %v1130 = vunpack.c.l.b16 %v669
    %v1131 = vunpack.c.h.b16 %v669
    %v1132 = vunpack.c.l.b16 %v670
    %v1133 = vunpack.c.h.b16 %v670
    %v1134 = vunpack.c.l.b16 %v671
    %v1135 = vunpack.c.h.b16 %v671
    %v1136 = vunpack.c.l.b16 %v672
    %v1137 = vunpack.c.h.b16 %v672
    %v1138 = vunpack.c.l.b16 %v673
    %v1139 = vunpack.c.h.b16 %v673
    %v1140 = vunpack.c.l.b16 %v674
    %v1141 = vunpack.c.h.b16 %v674
    %v1142 = vunpack.c.l.b16 %v675
    %v1143 = vunpack.c.h.b16 %v675
    %v1144 = vunpack.c.l.b16 %v676
    %v1145 = vunpack.c.h.b16 %v676
    %v1146 = vunpack.c.l.b16 %v677
    %v1147 = vunpack.c.h.b16 %v677
    %v1148 = vunpack.c.l.b16 %v678
    %v1149 = vunpack.c.h.b16 %v678
    %v1150 = vunpack.c.l.b16 %v679
    %v1151 = vunpack.c.h.b16 %v679
    %v1152 = vunpack.c.l.b16 %v680
    %v1153 = vunpack.c.h.b16 %v680
    %v1154 = vunpack.c.l.b16 %v681
    %v1155 = vunpack.c.h.b16 %v681
    %v1156 = vunpack.c.l.b16 %v682
    %v1157 = vunpack.c.h.b16 %v682
    %v1158 = vunpack.c.l.b16 %v683
    %v1159 = vunpack.c.h.b16 %v683
    %v1160 = vunpack.c.l.b16 %v684
    %v1161 = vunpack.c.h.b16 %v684
    %v1162 = vunpack.c.l.b16 %v685
    %v1163 = vunpack.c.h.b16 %v685
    %v1164 = vunpack.c.l.b16 %v686
    %v1165 = vunpack.c.h.b16 %v686
    %v1166 = vunpack.c.l.b16 %v687
    %v1167 = vunpack.c.h.b16 %v687
    %v1168 = vunpack.c.l.b16 %v688
    %v1169 = vunpack.c.h.b16 %v688
    %v1170 = vunpack.c.l.b16 %v689
    %v1171 = vunpack.c.h.b16 %v689
    %v1172 = vunpack.c.l.b16 %v690
    %v1173 = vunpack.c.h.b16 %v690
    %v1174 = vunpack.c.l.b16 %v691
    %v1175 = vunpack.c.h.b16 %v691
    %v1176 = vunpack.c.l.b16 %v692
    %v1177 = vunpack.c.h.b16 %v692
    %v1178 = vunpack.c.l.b16 %v693
    %v1179 = vunpack.c.h.b16 %v693
    %v1180 = vunpack.c.l.b16 %v694
    %v1181 = vunpack.c.h.b16 %v694
    %v1182 = vunpack.c.l.b16 %v695
    %v1183 = vunpack.c.h.b16 %v695
    %v1184 = vunpack.c.l.b16 %v696
    %v1185 = vunpack.c.h.b16 %v696
    %v1186 = vunpack.c.l.b16 %v697
    %v1187 = vunpack.c.h.b16 %v697
    %v1188 = vunpack.c.l.b16 %v698
    %v1189 = vunpack.c.h.b16 %v698
    %v1190 = vunpack.c.l.b16 %v699
    %v1191 = vunpack.c.h.b16 %v699
    %v1192 = vunpack.c.l.b16 %v700
    %v1193 = vunpack.c.h.b16 %v700
    %v1194 = vunpack.c.l.b16 %v701
    %v1195 = vunpack.c.h.b16 %v701
    %v1196 = vunpack.c.l.b16 %v702
    %v1197 = vunpack.c.h.b16 %v702
    %v1198 = vunpack.c.l.b16 %v703
    %v1199 = vunpack.c.h.b16 %v703
    %v1200 = vunpack.c.l.b16 %v704
    %v1201 = vunpack.c.h.b16 %v704
    %v1202 = vunpack.c.l.b16 %v705
    %v1203 = vunpack.c.h.b16 %v705
    %v1204 = vunpack.c.l.b16 %v706
    %v1205 = vunpack.c.h.b16 %v706
    %v1206 = vunpack.c.l.b16 %v707
    %v1207 = vunpack.c.h.b16 %v707
    %v1208 = vunpack.c.l.b16 %v708
    %v1209 = vunpack.c.h.b16 %v708
    %v1210 = vunpack.c.l.b16 %v709
    %v1211 = vunpack.c.h.b16 %v709
    %v1212 = vunpack.c.l.b16 %v710
    %v1213 = vunpack.c.h.b16 %v710
    %v1214 = vunpack.c.l.b16 %v711
    %v1215 = vunpack.c.h.b16 %v711
    %v1216 = vunpack.c.l.b16 %v712
    %v1217 = vunpack.c.h.b16 %v712
    %v1218 = vunpack.c.l.b16 %v713
    %v1219 = vunpack.c.h.b16 %v713
    %v1220 = vunpack.c.l.b16 %v714
    %v1221 = vunpack.c.h.b16 %v714
    %v1222 = vunpack.c.l.b16 %v715
    %v1223 = vunpack.c.h.b16 %v715
    %v1224 = vunpack.c.l.b16 %v716
    %v1225 = vunpack.c.h.b16 %v716
    %v1226 = vunpack.c.l.b16 %v717
    %v1227 = vunpack.c.h.b16 %v717
    %v1228 = vunpack.c.l.b16 %v718
    %v1229 = vunpack.c.h.b16 %v718
    %v1230 = vunpack.c.l.b16 %v719
    %v1231 = vunpack.c.h.b16 %v719
    %v1232 = vunpack.c.l.b16 %v720
    %v1233 = vunpack.c.h.b16 %v720
    %v1234 = vunpack.c.l.b16 %v721
    %v1235 = vunpack.c.h.b16 %v721
    %v1236 = vunpack.c.l.b16 %v722
    %v1237 = vunpack.c.h.b16 %v722
    %v1238 = vunpack.c.l.b16 %v723
    %v1239 = vunpack.c.h.b16 %v723
    %v1240 = vunpack.c.l.b16 %v724
    %v1241 = vunpack.c.h.b16 %v724
    %v1242 = vunpack.c.l.b16 %v725
    %v1243 = vunpack.c.h.b16 %v725
    %v1244 = vunpack.c.l.b16 %v726
    %v1245 = vunpack.c.h.b16 %v726
    %v1246 = vunpack.c.l.b16 %v727
    %v1247 = vunpack.c.h.b16 %v727
    %v1248 = vunpack.c.l.b16 %v728
    %v1249 = vunpack.c.h.b16 %v728
    %v1250 = vunpack.c.l.b16 %v729
    %v1251 = vunpack.c.h.b16 %v729
    %v1252 = vunpack.c.l.b16 %v730
    %v1253 = vunpack.c.h.b16 %v730
    %v1254 = vunpack.c.l.b16 %v731
    %v1255 = vunpack.c.h.b16 %v731
    %v1256 = vunpack.c.l.b16 %v732
    %v1257 = vunpack.c.h.b16 %v732
    %v1258 = vunpack.c.l.b16 %v733
    %v1259 = vunpack.c.h.b16 %v733
    %v1260 = vunpack.c.l.b16 %v734
    %v1261 = vunpack.c.h.b16 %v734
    %v1262 = vunpack.c.l.b16 %v735
    %v1263 = vunpack.c.h.b16 %v735
    %v1264 = vunpack.c.l.b16 %v736
    %v1265 = vunpack.c.h.b16 %v736
    %v1266 = vunpack.c.l.b16 %v737
    %v1267 = vunpack.c.h.b16 %v737
    %v1268 = vunpack.c.l.b16 %v738
    %v1269 = vunpack.c.h.b16 %v738
    %v1270 = vunpack.c.l.b16 %v739
    %v1271 = vunpack.c.h.b16 %v739
    %v1272 = vunpack.c.l.b16 %v740
    %v1273 = vunpack.c.h.b16 %v740
    %v1274 = vunpack.c.l.b16 %v741
    %v1275 = vunpack.c.h.b16 %v741
    %v1276 = vunpack.c.l.b16 %v742
    %v1277 = vunpack.c.h.b16 %v742
    %v1278 = vunpack.c.l.b16 %v743
    %v1279 = vunpack.c.h.b16 %v743
    %v1280 = vunpack.c.l.b16 %v744
    %v1281 = vunpack.c.h.b16 %v744
    %v1282 = vunpack.c.l.b16 %v745
    %v1283 = vunpack.c.h.b16 %v745
    %v1284 = vunpack.c.l.b16 %v746
    %v1285 = vunpack.c.h.b16 %v746
    %v1286 = vunpack.c.l.b16 %v747
    %v1287 = vunpack.c.h.b16 %v747
    %v1288 = vunpack.c.l.b16 %v748
    %v1289 = vunpack.c.h.b16 %v748
    %v1290 = vunpack.c.l.b16 %v749
    %v1291 = vunpack.c.h.b16 %v749
    %v1292 = vunpack.c.l.b16 %v750
    %v1293 = vunpack.c.h.b16 %v750
    %v1294 = vunpack.c.l.b16 %v751
    %v1295 = vunpack.c.h.b16 %v751
    %v1296 = vunpack.c.l.b16 %v752
    %v1297 = vunpack.c.h.b16 %v752
    %v1298 = vunpack.c.l.b16 %v753
    %v1299 = vunpack.c.h.b16 %v753
    %v1300 = vunpack.c.l.b16 %v754
    %v1301 = vunpack.c.h.b16 %v754
    %v1302 = vunpack.c.l.b16 %v755
    %v1303 = vunpack.c.h.b16 %v755
    %v1304 = vunpack.c.l.b16 %v756
    %v1305 = vunpack.c.h.b16 %v756
    %v1306 = vunpack.c.l.b16 %v757
    %v1307 = vunpack.c.h.b16 %v757
    %v1308 = vunpack.c.l.b16 %v758
    %v1309 = vunpack.c.h.b16 %v758
    %v1310 = vunpack.c.l.b16 %v759
    %v1311 = vunpack.c.h.b16 %v759
    %v1312 = vunpack.c.l.b16 %v760
    %v1313 = vunpack.c.h.b16 %v760
    %v1314 = vunpack.c.l.b16 %v761
    %v1315 = vunpack.c.h.b16 %v761
    %v1316 = vunpack.c.l.b16 %v762
    %v1317 = vunpack.c.h.b16 %v762
    %v1318 = vunpack.c.l.b16 %v763
    %v1319 = vunpack.c.h.b16 %v763
    %v1320 = vunpack.c.l.b16 %v764
    %v1321 = vunpack.c.h.b16 %v764
    %v1322 = vunpack.c.l.b16 %v765
    %v1323 = vunpack.c.h.b16 %v765
    %v1324 = vunpack.c.l.b16 %v766
    %v1325 = vunpack.c.h.b16 %v766
    %v1326 = vunpack.c.l.b16 %v767
    %v1327 = vunpack.c.h.b16 %v767
    %v1328 = vunpack.c.l.b16 %v768
    %v1329 = vunpack.c.h.b16 %v768
    %v1330 = vunpack.c.l.b16 %v769
    %v1331 = vunpack.c.h.b16 %v769
    %v1332 = vunpack.c.l.b16 %v770
    %v1333 = vunpack.c.h.b16 %v770
    %v1334 = vunpack.c.l.b16 %v771
    %v1335 = vunpack.c.h.b16 %v771
    %v1336 = vunpack.c.l.b16 %v772
    %v1337 = vunpack.c.h.b16 %v772
    %v1338 = vunpack.c.l.b16 %v773
    %v1339 = vunpack.c.h.b16 %v773
    %v1340 = vunpack.c.l.b16 %v774
    %v1341 = vunpack.c.h.b16 %v774
    %v1342 = vunpack.c.l.b16 %v775
    %v1343 = vunpack.c.h.b16 %v775
    %v1344 = vunpack.c.l.b16 %v776
    %v1345 = vunpack.c.h.b16 %v776
    %v1346 = vunpack.c.l.b16 %v777
    %v1347 = vunpack.c.h.b16 %v777
    %v1348 = vunpack.c.l.b16 %v778
    %v1349 = vunpack.c.h.b16 %v778
    %v1350 = vpack.c.b16 %v1098, %v1094
    %v1351 = vpack.c.b16 %v1099, %v1095
    %v1352 = vpack.c.b16 %v1100, %v1096
    %v1353 = vpack.c.b16 %v1101, %v1097
    %v1354 = vpack.c.b16 %v1106, %v1102
    %v1355 = vpack.c.b16 %v1107, %v1103
    %v1356 = vpack.c.b16 %v1108, %v1104
    %v1357 = vpack.c.b16 %v1109, %v1105
    %v1358 = vpack.c.b16 %v1114, %v1110
    %v1359 = vpack.c.b16 %v1115, %v1111
    %v1360 = vpack.c.b16 %v1116, %v1112
    %v1361 = vpack.c.b16 %v1117, %v1113
    %v1362 = vpack.c.b16 %v1122, %v1118
    %v1363 = vpack.c.b16 %v1123, %v1119
    %v1364 = vpack.c.b16 %v1124, %v1120
    %v1365 = vpack.c.b16 %v1125, %v1121
    %v1366 = vpack.c.b16 %v1130, %v1126
    %v1367 = vpack.c.b16 %v1131, %v1127
    %v1368 = vpack.c.b16 %v1132, %v1128
    %v1369 = vpack.c.b16 %v1133, %v1129
    %v1370 = vpack.c.b16 %v1138, %v1134
    %v1371 = vpack.c.b16 %v1139, %v1135
    %v1372 = vpack.c.b16 %v1140, %v1136
    %v1373 = vpack.c.b16 %v1141, %v1137
    %v1374 = vpack.c.b16 %v1146, %v1142
    %v1375 = vpack.c.b16 %v1147, %v1143
    %v1376 = vpack.c.b16 %v1148, %v1144
    %v1377 = vpack.c.b16 %v1149, %v1145
    %v1378 = vpack.c.b16 %v1154, %v1150
    %v1379 = vpack.c.b16 %v1155, %v1151
    %v1380 = vpack.c.b16 %v1156, %v1152
    %v1381 = vpack.c.b16 %v1157, %v1153
    %v1382 = vpack.c.b16 %v1162, %v1158
    %v1383 = vpack.c.b16 %v1163, %v1159
    %v1384 = vpack.c.b16 %v1164, %v1160
    %v1385 = vpack.c.b16 %v1165, %v1161
    %v1386 = vpack.c.b16 %v1170, %v1166
    %v1387 = vpack.c.b16 %v1171, %v1167
    %v1388 = vpack.c.b16 %v1172, %v1168
    %v1389 = vpack.c.b16 %v1173, %v1169
    %v1390 = vpack.c.b16 %v1178, %v1174
    %v1391 = vpack.c.b16 %v1179, %v1175
    %v1392 = vpack.c.b16 %v1180, %v1176
    %v1393 = vpack.c.b16 %v1181, %v1177
    %v1394 = vpack.c.b16 %v1186, %v1182
    %v1395 = vpack.c.b16 %v1187, %v1183
    %v1396 = vpack.c.b16 %v1188, %v1184
    %v1397 = vpack.c.b16 %v1189, %v1185
    %v1398 = vpack.c.b16 %v1194, %v1190
    %v1399 = vpack.c.b16 %v1195, %v1191
    %v1400 = vpack.c.b16 %v1196, %v1192
    %v1401 = vpack.c.b16 %v1197, %v1193
    %v1402 = vpack.c.b16 %v1202, %v1198
    %v1403 = vpack.c.b16 %v1203, %v1199
    %v1404 = vpack.c.b16 %v1204, %v1200
    %v1405 = vpack.c.b16 %v1205, %v1201
    %v1406 = vpack.c.b16 %v1210, %v1206
    %v1407 = vpack.c.b16 %v1211, %v1207
    %v1408 = vpack.c.b16 %v1212, %v1208
    %v1409 = vpack.c.b16 %v1213, %v1209
    %v1410 = vpack.c.b16 %v1218, %v1214
    %v1411 = vpack.c.b16 %v1219, %v1215
    %v1412 = vpack.c.b16 %v1220, %v1216
    %v1413 = vpack.c.b16 %v1221, %v1217
    %v1414 = vpack.c.b16 %v1226, %v1222
    %v1415 = vpack.c.b16 %v1227, %v1223
    %v1416 = vpack.c.b16 %v1228, %v1224
    %v1417 = vpack.c.b16 %v1229, %v1225
    %v1418 = vpack.c.b16 %v1234, %v1230
    %v1419 = vpack.c.b16 %v1235, %v1231
    %v1420 = vpack.c.b16 %v1236, %v1232
    %v1421 = vpack.c.b16 %v1237, %v1233
    %v1422 = vpack.c.b16 %v1242, %v1238
    %v1423 = vpack.c.b16 %v1243, %v1239
    %v1424 = vpack.c.b16 %v1244, %v1240
    %v1425 = vpack.c.b16 %v1245, %v1241
    %v1426 = vpack.c.b16 %v1250, %v1246
    %v1427 = vpack.c.b16 %v1251, %v1247
    %v1428 = vpack.c.b16 %v1252, %v1248
    %v1429 = vpack.c.b16 %v1253, %v1249
    %v1430 = vpack.c.b16 %v1258, %v1254
    %v1431 = vpack.c.b16 %v1259, %v1255
    %v1432 = vpack.c.b16 %v1260, %v1256
    %v1433 = vpack.c.b16 %v1261, %v1257
    %v1434 = vpack.c.b16 %v1266, %v1262
    %v1435 = vpack.c.b16 %v1267, %v1263
    %v1436 = vpack.c.b16 %v1268, %v1264
    %v1437 = vpack.c.b16 %v1269, %v1265
    %v1438 = vpack.c.b16 %v1274, %v1270
    %v1439 = vpack.c.b16 %v1275, %v1271
    %v1440 = vpack.c.b16 %v1276, %v1272
    %v1441 = vpack.c.b16 %v1277, %v1273
    %v1442 = vpack.c.b16 %v1282, %v1278
    %v1443 = vpack.c.b16 %v1283, %v1279
    %v1444 = vpack.c.b16 %v1284, %v1280
    %v1445 = vpack.c.b16 %v1285, %v1281
    %v1446 = vpack.c.b16 %v1290, %v1286
    %v1447 = vpack.c.b16 %v1291, %v1287
    %v1448 = vpack.c.b16 %v1292, %v1288
    %v1449 = vpack.c.b16 %v1293, %v1289
    %v1450 = vpack.c.b16 %v1298, %v1294
    %v1451 = vpack.c.b16 %v1299, %v1295
    %v1452 = vpack.c.b16 %v1300, %v1296
    %v1453 = vpack.c.b16 %v1301, %v1297
    %v1454 = vpack.c.b16 %v1306, %v1302
    %v1455 = vpack.c.b16 %v1307, %v1303
    %v1456 = vpack.c.b16 %v1308, %v1304
    %v1457 = vpack.c.b16 %v1309, %v1305
    %v1458 = vpack.c.b16 %v1314, %v1310
    %v1459 = vpack.c.b16 %v1315, %v1311
    %v1460 = vpack.c.b16 %v1316, %v1312
    %v1461 = vpack.c.b16 %v1317, %v1313
    %v1462 = vpack.c.b16 %v1322, %v1318
    %v1463 = vpack.c.b16 %v1323, %v1319
    %v1464 = vpack.c.b16 %v1324, %v1320
    %v1465 = vpack.c.b16 %v1325, %v1321
    %v1466 = vpack.c.b16 %v1330, %v1326
    %v1467 = vpack.c.b16 %v1331, %v1327
    %v1468 = vpack.c.b16 %v1332, %v1328
    %v1469 = vpack.c.b16 %v1333, %v1329
    %v1470 = vpack.c.b16 %v1338, %v1334
    %v1471 = vpack.c.b16 %v1339, %v1335
    %v1472 = vpack.c.b16 %v1340, %v1336
    %v1473 = vpack.c.b16 %v1341, %v1337
    %v1474 = vpack.c.b16 %v1346, %v1342
    %v1475 = vpack.c.b16 %v1347, %v1343
    %v1476 = vpack.c.b16 %v1348, %v1344
    %v1477 = vpack.c.b16 %v1349, %v1345
    %1606 = vmatprep.subr.bf16.mxu0 %v1351
    %1607 = vmatpush1.bf16.msra.mxu0 %v1350
    %1608 = vmatprep.subr.bf16.mxu0 %v1355
    %1609 = vmatpush1.bf16.msra.mxu0 %v1354
    %1610 = vmatprep.subr.bf16.mxu0 %v1359
    %1611 = vmatpush1.bf16.msra.mxu0 %v1358
    %1612 = vmatprep.subr.bf16.mxu0 %v1363
    %1613 = vmatpush1.bf16.msra.mxu0 %v1362
    %1614 = vmatprep.subr.bf16.mxu0 %v1367
    %1615 = vmatpush1.bf16.msra.mxu0 %v1366
    %1616 = vmatprep.subr.bf16.mxu0 %v1371
    %1617 = vmatpush1.bf16.msra.mxu0 %v1370
    %1618 = vmatprep.subr.bf16.mxu0 %v1375
    %1619 = vmatpush1.bf16.msra.mxu0 %v1374
    %1620 = vmatprep.subr.bf16.mxu0 %v1379
    %1621 = vmatpush1.bf16.msra.mxu0 %v1378
    %1622 = vmatprep.subr.bf16.mxu0 %v1383
    %1623 = vmatpush1.bf16.msra.mxu0 %v1382
    %1624 = vmatprep.subr.bf16.mxu0 %v1387
    %1625 = vmatpush1.bf16.msra.mxu0 %v1386
    %1626 = vmatprep.subr.bf16.mxu0 %v1391
    %1627 = vmatpush1.bf16.msra.mxu0 %v1390
    %1628 = vmatprep.subr.bf16.mxu0 %v1395
    %1629 = vmatpush1.bf16.msra.mxu0 %v1394
    %1630 = vmatprep.subr.bf16.mxu0 %v1399
    %1631 = vmatpush1.bf16.msra.mxu0 %v1398
    %1632 = vmatprep.subr.bf16.mxu0 %v1403
    %1633 = vmatpush1.bf16.msra.mxu0 %v1402
    %1634 = vmatprep.subr.bf16.mxu0 %v1407
    %1635 = vmatpush1.bf16.msra.mxu0 %v1406
    %1636 = vmatprep.subr.bf16.mxu0 %v1411
    %1637 = vmatpush1.bf16.msra.mxu0 %v1410
    %1638 = vmatprep.mubr.bf16.mxu0 %v800
    %1639 = vmatmul.mubr.bf16.gmra.mrb[0].mxu0 %v799
    %v1640 = vpop.f32.mrb[0].mxu0
    %v1641 = vadd.f32 %v891, %v1640
    %v1642 = vpop.f32.mrb[0].mxu0
    %v1643 = vadd.f32 %v893, %v1642
    %v1644 = vpop.f32.mrb[0].mxu0
    %v1645 = vpop.f32.mrb[0].mxu0
    %1646 = vdwg.mxu0
    %1647 = vmatprep.subr.bf16.mxu0 %v1415
    %1648 = vmatpush1.bf16.msra.mxu0 %v1414
    %1649 = vmatprep.subr.bf16.mxu0 %v1419
    %1650 = vmatpush1.bf16.msra.mxu0 %v1418
    %1651 = vmatprep.subr.bf16.mxu0 %v1423
    %1652 = vmatpush1.bf16.msra.mxu0 %v1422
    %1653 = vmatprep.subr.bf16.mxu0 %v1427
    %1654 = vmatpush1.bf16.msra.mxu0 %v1426
    %1655 = vmatprep.subr.bf16.mxu0 %v1431
    %1656 = vmatpush1.bf16.msra.mxu0 %v1430
    %1657 = vmatprep.subr.bf16.mxu0 %v1435
    %1658 = vmatpush1.bf16.msra.mxu0 %v1434
    %1659 = vmatprep.subr.bf16.mxu0 %v1439
    %1660 = vmatpush1.bf16.msra.mxu0 %v1438
    %1661 = vmatprep.subr.bf16.mxu0 %v1443
    %1662 = vmatpush1.bf16.msra.mxu0 %v1442
    %1663 = vmatprep.subr.bf16.mxu0 %v1447
    %1664 = vmatpush1.bf16.msra.mxu0 %v1446
    %1665 = vmatprep.subr.bf16.mxu0 %v1451
    %1666 = vmatpush1.bf16.msra.mxu0 %v1450
    %1667 = vmatprep.subr.bf16.mxu0 %v1455
    %1668 = vmatpush1.bf16.msra.mxu0 %v1454
    %1669 = vmatprep.subr.bf16.mxu0 %v1459
    %1670 = vmatpush1.bf16.msra.mxu0 %v1458
    %1671 = vmatprep.subr.bf16.mxu0 %v1463
    %1672 = vmatpush1.bf16.msra.mxu0 %v1462
    %1673 = vmatprep.subr.bf16.mxu0 %v1467
    %1674 = vmatpush1.bf16.msra.mxu0 %v1466
    %1675 = vmatprep.subr.bf16.mxu0 %v1471
    %1676 = vmatpush1.bf16.msra.mxu0 %v1470
    %1677 = vmatprep.subr.bf16.mxu0 %v1475
    %1678 = vmatpush1.bf16.msra.mxu0 %v1474
    %1679 = vmatprep.mubr.bf16.mxu0 %v802
    %1680 = vmatmul.mubr.bf16.gmra.mrb[0].mxu0 %v801
    %v1681 = vpop.f32.mrb[0].mxu0
    %v1682 = vadd.f32 %v1641, %v1681
    %v1683 = vpop.f32.mrb[0].mxu0
    %v1684 = vadd.f32 %v1643, %v1683
    %v1685 = vpop.f32.mrb[0].mxu0
    %v1686 = vpop.f32.mrb[0].mxu0
    %1687 = vdwg.mxu0
    %1688 = vmatprep.subr.bf16.mxu0 %v1353
    %1689 = vmatpush1.bf16.msra.mxu0 %v1352
    %1690 = vmatprep.subr.bf16.mxu0 %v1357
    %1691 = vmatpush1.bf16.msra.mxu0 %v1356
    %1692 = vmatprep.subr.bf16.mxu0 %v1361
    %1693 = vmatpush1.bf16.msra.mxu0 %v1360
    %1694 = vmatprep.subr.bf16.mxu0 %v1365
    %1695 = vmatpush1.bf16.msra.mxu0 %v1364
    %1696 = vmatprep.subr.bf16.mxu0 %v1369
    %1697 = vmatpush1.bf16.msra.mxu0 %v1368
    %1698 = vmatprep.subr.bf16.mxu0 %v1373
    %1699 = vmatpush1.bf16.msra.mxu0 %v1372
    %1700 = vmatprep.subr.bf16.mxu0 %v1377
    %1701 = vmatpush1.bf16.msra.mxu0 %v1376
    %1702 = vmatprep.subr.bf16.mxu0 %v1381
    %1703 = vmatpush1.bf16.msra.mxu0 %v1380
    %1704 = vmatprep.subr.bf16.mxu0 %v1385
    %1705 = vmatpush1.bf16.msra.mxu0 %v1384
    %1706 = vmatprep.subr.bf16.mxu0 %v1389
    %1707 = vmatpush1.bf16.msra.mxu0 %v1388
    %1708 = vmatprep.subr.bf16.mxu0 %v1393
    %1709 = vmatpush1.bf16.msra.mxu0 %v1392
    %1710 = vmatprep.subr.bf16.mxu0 %v1397
    %1711 = vmatpush1.bf16.msra.mxu0 %v1396
    %1712 = vmatprep.subr.bf16.mxu0 %v1401
    %1713 = vmatpush1.bf16.msra.mxu0 %v1400
    %1714 = vmatprep.subr.bf16.mxu0 %v1405
    %1715 = vmatpush1.bf16.msra.mxu0 %v1404
    %1716 = vmatprep.subr.bf16.mxu0 %v1409
    %1717 = vmatpush1.bf16.msra.mxu0 %v1408
    %1718 = vmatprep.subr.bf16.mxu0 %v1413
    %1719 = vmatpush1.bf16.msra.mxu0 %v1412
    %1720 = vmatprep.mubr.bf16.mxu0 %v800
    %1721 = vmatmul.mubr.bf16.gmra.mrb[0].mxu0 %v799
    %v1722 = vpop.f32.mrb[0].mxu0
    %v1723 = vadd.f32 %v962, %v1722
    %v1724 = vpop.f32.mrb[0].mxu0
    %v1725 = vadd.f32 %v964, %v1724
    %v1726 = vpop.f32.mrb[0].mxu0
    %v1727 = vpop.f32.mrb[0].mxu0
    %1728 = vdwg.mxu0
    %1729 = vmatprep.subr.bf16.mxu0 %v1417
    %1730 = vmatpush1.bf16.msra.mxu0 %v1416
    %1731 = vmatprep.subr.bf16.mxu0 %v1421
    %1732 = vmatpush1.bf16.msra.mxu0 %v1420
    %1733 = vmatprep.subr.bf16.mxu0 %v1425
    %1734 = vmatpush1.bf16.msra.mxu0 %v1424
    %1735 = vmatprep.subr.bf16.mxu0 %v1429
    %1736 = vmatpush1.bf16.msra.mxu0 %v1428
    %1737 = vmatprep.subr.bf16.mxu0 %v1433
    %1738 = vmatpush1.bf16.msra.mxu0 %v1432
    %1739 = vmatprep.subr.bf16.mxu0 %v1437
    %1740 = vmatpush1.bf16.msra.mxu0 %v1436
    %1741 = vmatprep.subr.bf16.mxu0 %v1441
    %1742 = vmatpush1.bf16.msra.mxu0 %v1440
    %1743 = vmatprep.subr.bf16.mxu0 %v1445
    %1744 = vmatpush1.bf16.msra.mxu0 %v1444
    %1745 = vmatprep.subr.bf16.mxu0 %v1449
    %1746 = vmatpush1.bf16.msra.mxu0 %v1448
    %1747 = vmatprep.subr.bf16.mxu0 %v1453
    %1748 = vmatpush1.bf16.msra.mxu0 %v1452
    %1749 = vmatprep.subr.bf16.mxu0 %v1457
    %1750 = vmatpush1.bf16.msra.mxu0 %v1456
    %1751 = vmatprep.subr.bf16.mxu0 %v1461
    %1752 = vmatpush1.bf16.msra.mxu0 %v1460
    %1753 = vmatprep.subr.bf16.mxu0 %v1465
    %1754 = vmatpush1.bf16.msra.mxu0 %v1464
    %1755 = vmatprep.subr.bf16.mxu0 %v1469
    %1756 = vmatpush1.bf16.msra.mxu0 %v1468
    %1757 = vmatprep.subr.bf16.mxu0 %v1473
    %1758 = vmatpush1.bf16.msra.mxu0 %v1472
    %1759 = vmatprep.subr.bf16.mxu0 %v1477
    %1760 = vmatpush1.bf16.msra.mxu0 %v1476
    %1761 = vmatprep.mubr.bf16.mxu0 %v802
    %1762 = vmatmul.mubr.bf16.gmra.mrb[0].mxu0 %v801
    %v1763 = vpop.f32.mrb[0].mxu0
    %v1764 = vadd.f32 %v1723, %v1763
    %v1765 = vpop.f32.mrb[0].mxu0
    %v1766 = vadd.f32 %v1725, %v1765
    %v1767 = vpop.f32.mrb[0].mxu0
    %v1768 = vpop.f32.mrb[0].mxu0
    %1769 = vdwg.mxu0
    %v1772 = vlaneseq
    %v1773 = vshrl.u32 %v1772, 7
    %v1774 = vsub.s32 2, %v1773
    %v1775 = vrot.slane %v620, %v1774
    %v1776 = vlaneseq
    %v1777 = vshrl.u32 %v1776, 7
    %v1778 = vsub.s32 6, %v1777
    %v1779 = vrot.slane %v620, %v1778
    %v1780 = vlaneseq
    %v1781 = vshrl.u32 %v1780, 7
    %v1782 = vsub.s32 2, %v1781
    %v1783 = vrot.slane %v621, %v1782
    %v1784 = vlaneseq
    %v1785 = vshrl.u32 %v1784, 7
    %v1786 = vsub.s32 6, %v1785
    %v1787 = vrot.slane %v621, %v1786
    %v1792 = vpack.c.bf16 %v1775, %v1775
    %v1793 = vpack.c.bf16 %v1779, %v1779
    %v1794 = vpack.c.bf16 %v1783, %v1783
    %v1795 = vpack.c.bf16 %v1787, %v1787
    %v1800 = vrot.slane %v1792, 1
    %v1801 = vrot.slane %v1793, 1
    %v1802 = vrot.slane %v1794, 1
    %v1803 = vrot.slane %v1795, 1
    %1808 = vmatprep.subr.bf16.mxu0 %v1351
    %1809 = vmatpush1.bf16.msra.mxu0 %v1350
    %1810 = vmatprep.subr.bf16.mxu0 %v1355
    %1811 = vmatpush1.bf16.msra.mxu0 %v1354
    %1812 = vmatprep.subr.bf16.mxu0 %v1359
    %1813 = vmatpush1.bf16.msra.mxu0 %v1358
    %1814 = vmatprep.subr.bf16.mxu0 %v1363
    %1815 = vmatpush1.bf16.msra.mxu0 %v1362
    %1816 = vmatprep.subr.bf16.mxu0 %v1367
    %1817 = vmatpush1.bf16.msra.mxu0 %v1366
    %1818 = vmatprep.subr.bf16.mxu0 %v1371
    %1819 = vmatpush1.bf16.msra.mxu0 %v1370
    %1820 = vmatprep.subr.bf16.mxu0 %v1375
    %1821 = vmatpush1.bf16.msra.mxu0 %v1374
    %1822 = vmatprep.subr.bf16.mxu0 %v1379
    %1823 = vmatpush1.bf16.msra.mxu0 %v1378
    %1824 = vmatprep.subr.bf16.mxu0 %v1383
    %1825 = vmatpush1.bf16.msra.mxu0 %v1382
    %1826 = vmatprep.subr.bf16.mxu0 %v1387
    %1827 = vmatpush1.bf16.msra.mxu0 %v1386
    %1828 = vmatprep.subr.bf16.mxu0 %v1391
    %1829 = vmatpush1.bf16.msra.mxu0 %v1390
    %1830 = vmatprep.subr.bf16.mxu0 %v1395
    %1831 = vmatpush1.bf16.msra.mxu0 %v1394
    %1832 = vmatprep.subr.bf16.mxu0 %v1399
    %1833 = vmatpush1.bf16.msra.mxu0 %v1398
    %1834 = vmatprep.subr.bf16.mxu0 %v1403
    %1835 = vmatpush1.bf16.msra.mxu0 %v1402
    %1836 = vmatprep.subr.bf16.mxu0 %v1407
    %1837 = vmatpush1.bf16.msra.mxu0 %v1406
    %1838 = vmatprep.subr.bf16.mxu0 %v1411
    %1839 = vmatpush1.bf16.msra.mxu0 %v1410
    %1840 = vmatprep.mubr.bf16.mxu0 %v1801
    %1841 = vmatmul.mubr.bf16.gmra.mrb[0].mxu0 %v1800
    %v1842 = vpop.f32.mrb[0].mxu0
    %v1843 = vadd.f32 0.0, %v1842
    %v1844 = vpop.f32.mrb[0].mxu0
    %v1845 = vadd.f32 0.0, %v1844
    %v1846 = vpop.f32.mrb[0].mxu0
    %v1847 = vpop.f32.mrb[0].mxu0
    %1848 = vdwg.mxu0
    %1849 = vmatprep.subr.bf16.mxu0 %v1415
    %1850 = vmatpush1.bf16.msra.mxu0 %v1414
    %1851 = vmatprep.subr.bf16.mxu0 %v1419
    %1852 = vmatpush1.bf16.msra.mxu0 %v1418
    %1853 = vmatprep.subr.bf16.mxu0 %v1423
    %1854 = vmatpush1.bf16.msra.mxu0 %v1422
    %1855 = vmatprep.subr.bf16.mxu0 %v1427
    %1856 = vmatpush1.bf16.msra.mxu0 %v1426
    %1857 = vmatprep.subr.bf16.mxu0 %v1431
    %1858 = vmatpush1.bf16.msra.mxu0 %v1430
    %1859 = vmatprep.subr.bf16.mxu0 %v1435
    %1860 = vmatpush1.bf16.msra.mxu0 %v1434
    %1861 = vmatprep.subr.bf16.mxu0 %v1439
    %1862 = vmatpush1.bf16.msra.mxu0 %v1438
    %1863 = vmatprep.subr.bf16.mxu0 %v1443
    %1864 = vmatpush1.bf16.msra.mxu0 %v1442
    %1865 = vmatprep.subr.bf16.mxu0 %v1447
    %1866 = vmatpush1.bf16.msra.mxu0 %v1446
    %1867 = vmatprep.subr.bf16.mxu0 %v1451
    %1868 = vmatpush1.bf16.msra.mxu0 %v1450
    %1869 = vmatprep.subr.bf16.mxu0 %v1455
    %1870 = vmatpush1.bf16.msra.mxu0 %v1454
    %1871 = vmatprep.subr.bf16.mxu0 %v1459
    %1872 = vmatpush1.bf16.msra.mxu0 %v1458
    %1873 = vmatprep.subr.bf16.mxu0 %v1463
    %1874 = vmatpush1.bf16.msra.mxu0 %v1462
    %1875 = vmatprep.subr.bf16.mxu0 %v1467
    %1876 = vmatpush1.bf16.msra.mxu0 %v1466
    %1877 = vmatprep.subr.bf16.mxu0 %v1471
    %1878 = vmatpush1.bf16.msra.mxu0 %v1470
    %1879 = vmatprep.subr.bf16.mxu0 %v1475
    %1880 = vmatpush1.bf16.msra.mxu0 %v1474
    %1881 = vmatprep.mubr.bf16.mxu0 %v1803
    %1882 = vmatmul.mubr.bf16.gmra.mrb[0].mxu0 %v1802
    %v1883 = vpop.f32.mrb[0].mxu0
    %v1884 = vadd.f32 %v1843, %v1883
    %v1885 = vpop.f32.mrb[0].mxu0
    %v1886 = vadd.f32 %v1845, %v1885
    %v1887 = vpop.f32.mrb[0].mxu0
    %v1888 = vpop.f32.mrb[0].mxu0
    %1889 = vdwg.mxu0
    %1890 = vmatprep.subr.bf16.mxu0 %v1353
    %1891 = vmatpush1.bf16.msra.mxu0 %v1352
    %1892 = vmatprep.subr.bf16.mxu0 %v1357
    %1893 = vmatpush1.bf16.msra.mxu0 %v1356
    %1894 = vmatprep.subr.bf16.mxu0 %v1361
    %1895 = vmatpush1.bf16.msra.mxu0 %v1360
    %1896 = vmatprep.subr.bf16.mxu0 %v1365
    %1897 = vmatpush1.bf16.msra.mxu0 %v1364
    %1898 = vmatprep.subr.bf16.mxu0 %v1369
    %1899 = vmatpush1.bf16.msra.mxu0 %v1368
    %1900 = vmatprep.subr.bf16.mxu0 %v1373
    %1901 = vmatpush1.bf16.msra.mxu0 %v1372
    %1902 = vmatprep.subr.bf16.mxu0 %v1377
    %1903 = vmatpush1.bf16.msra.mxu0 %v1376
    %1904 = vmatprep.subr.bf16.mxu0 %v1381
    %1905 = vmatpush1.bf16.msra.mxu0 %v1380
    %1906 = vmatprep.subr.bf16.mxu0 %v1385
    %1907 = vmatpush1.bf16.msra.mxu0 %v1384
    %1908 = vmatprep.subr.bf16.mxu0 %v1389
    %1909 = vmatpush1.bf16.msra.mxu0 %v1388
    %1910 = vmatprep.subr.bf16.mxu0 %v1393
    %1911 = vmatpush1.bf16.msra.mxu0 %v1392
    %1912 = vmatprep.subr.bf16.mxu0 %v1397
    %1913 = vmatpush1.bf16.msra.mxu0 %v1396
    %1914 = vmatprep.subr.bf16.mxu0 %v1401
    %1915 = vmatpush1.bf16.msra.mxu0 %v1400
    %1916 = vmatprep.subr.bf16.mxu0 %v1405
    %1917 = vmatpush1.bf16.msra.mxu0 %v1404
    %1918 = vmatprep.subr.bf16.mxu0 %v1409
    %1919 = vmatpush1.bf16.msra.mxu0 %v1408
    %1920 = vmatprep.subr.bf16.mxu0 %v1413
    %1921 = vmatpush1.bf16.msra.mxu0 %v1412
    %1922 = vmatprep.mubr.bf16.mxu0 %v1801
    %1923 = vmatmul.mubr.bf16.gmra.mrb[0].mxu0 %v1800
    %v1924 = vpop.f32.mrb[0].mxu0
    %v1925 = vadd.f32 0.0, %v1924
    %v1926 = vpop.f32.mrb[0].mxu0
    %v1927 = vadd.f32 0.0, %v1926
    %v1928 = vpop.f32.mrb[0].mxu0
    %v1929 = vpop.f32.mrb[0].mxu0
    %1930 = vdwg.mxu0
    %1931 = vmatprep.subr.bf16.mxu0 %v1417
    %1932 = vmatpush1.bf16.msra.mxu0 %v1416
    %1933 = vmatprep.subr.bf16.mxu0 %v1421
    %1934 = vmatpush1.bf16.msra.mxu0 %v1420
    %1935 = vmatprep.subr.bf16.mxu0 %v1425
    %1936 = vmatpush1.bf16.msra.mxu0 %v1424
    %1937 = vmatprep.subr.bf16.mxu0 %v1429
    %1938 = vmatpush1.bf16.msra.mxu0 %v1428
    %1939 = vmatprep.subr.bf16.mxu0 %v1433
    %1940 = vmatpush1.bf16.msra.mxu0 %v1432
    %1941 = vmatprep.subr.bf16.mxu0 %v1437
    %1942 = vmatpush1.bf16.msra.mxu0 %v1436
    %1943 = vmatprep.subr.bf16.mxu0 %v1441
    %1944 = vmatpush1.bf16.msra.mxu0 %v1440
    %1945 = vmatprep.subr.bf16.mxu0 %v1445
    %1946 = vmatpush1.bf16.msra.mxu0 %v1444
    %1947 = vmatprep.subr.bf16.mxu0 %v1449
    %1948 = vmatpush1.bf16.msra.mxu0 %v1448
    %1949 = vmatprep.subr.bf16.mxu0 %v1453
    %1950 = vmatpush1.bf16.msra.mxu0 %v1452
    %1951 = vmatprep.subr.bf16.mxu0 %v1457
    %1952 = vmatpush1.bf16.msra.mxu0 %v1456
    %1953 = vmatprep.subr.bf16.mxu0 %v1461
    %1954 = vmatpush1.bf16.msra.mxu0 %v1460
    %1955 = vmatprep.subr.bf16.mxu0 %v1465
    %1956 = vmatpush1.bf16.msra.mxu0 %v1464
    %1957 = vmatprep.subr.bf16.mxu0 %v1469
    %1958 = vmatpush1.bf16.msra.mxu0 %v1468
    %1959 = vmatprep.subr.bf16.mxu0 %v1473
    %1960 = vmatpush1.bf16.msra.mxu0 %v1472
    %1961 = vmatprep.subr.bf16.mxu0 %v1477
    %1962 = vmatpush1.bf16.msra.mxu0 %v1476
    %1963 = vmatprep.mubr.bf16.mxu0 %v1803
    %1964 = vmatmul.mubr.bf16.gmra.mrb[0].mxu0 %v1802
    %v1965 = vpop.f32.mrb[0].mxu0
    %v1966 = vadd.f32 %v1925, %v1965
    %v1967 = vpop.f32.mrb[0].mxu0
    %v1968 = vadd.f32 %v1927, %v1967
    %v1969 = vpop.f32.mrb[0].mxu0
    %v1970 = vpop.f32.mrb[0].mxu0
    %1971 = vdwg.mxu0
    %v1976 = vcombine.low %v1884, %v1886
    %v1977 = vcombine.low %v1966, %v1968
    %v1978 = vrot.slane %v1976, 5
    %v1979 = vrot.slane %v1977, 5
    %v1982 = vadd.f32 %v73, %v1978
    %v1983 = vadd.f32 %v74, %v1979
    %v1985 = vrot.slane %v650, 3
    %v1986 = vsel %vm622, %v1985, 0
    %1988 = vmatprep.subr.mxu0 %v818
    %1989 = vmatpush1.msra.mxu0 %v816
    %1990 = vmatprep.subr.mxu0 0.0
    %1991 = vmatpush1.msra.mxu0 0.0
    %1992 = vmatprep.subr.mxu0 0.0
    %1993 = vmatpush1.msra.mxu0 0.0
    %1994 = vmatprep.subr.mxu0 0.0
    %1995 = vmatpush1.msra.mxu0 0.0
    %1996 = vmatprep.subr.mxu0 0.0
    %1997 = vmatpush1.msra.mxu0 0.0
    %1998 = vmatprep.subr.mxu0 0.0
    %1999 = vmatpush1.msra.mxu0 0.0
    %2000 = vmatprep.subr.mxu0 0.0
    %2001 = vmatpush1.msra.mxu0 0.0
    %2002 = vmatprep.subr.mxu0 0.0
    %2003 = vmatpush1.msra.mxu0 0.0
    %2004 = vmatprep.subr.mxu0 0.0
    %2005 = vmatpush1.msra.mxu0 0.0
    %2006 = vmatprep.subr.mxu0 0.0
    %2007 = vmatpush1.msra.mxu0 0.0
    %2008 = vmatprep.subr.mxu0 0.0
    %2009 = vmatpush1.msra.mxu0 0.0
    %2010 = vmatprep.subr.mxu0 0.0
    %2011 = vmatpush1.msra.mxu0 0.0
    %2012 = vmatprep.subr.mxu0 0.0
    %2013 = vmatpush1.msra.mxu0 0.0
    %2014 = vmatprep.subr.mxu0 0.0
    %2015 = vmatpush1.msra.mxu0 0.0
    %2016 = vmatprep.subr.mxu0 0.0
    %2017 = vmatpush1.msra.mxu0 0.0
    %2018 = vmatprep.subr.mxu0 0.0
    %2019 = vmatpush1.msra.mxu0 0.0
    %2020 = vmatprep.subr.mxu0 0.0
    %2021 = vmatpush1.msra.mxu0 0.0
    %2022 = vmatprep.subr.mxu0 0.0
    %2023 = vmatpush1.msra.mxu0 0.0
    %2024 = vmatprep.subr.mxu0 0.0
    %2025 = vmatpush1.msra.mxu0 0.0
    %2026 = vmatprep.subr.mxu0 0.0
    %2027 = vmatpush1.msra.mxu0 0.0
    %2028 = vmatprep.subr.mxu0 0.0
    %2029 = vmatpush1.msra.mxu0 0.0
    %2030 = vmatprep.subr.mxu0 0.0
    %2031 = vmatpush1.msra.mxu0 0.0
    %2032 = vmatprep.subr.mxu0 0.0
    %2033 = vmatpush1.msra.mxu0 0.0
    %2034 = vmatprep.subr.mxu0 0.0
    %2035 = vmatpush1.msra.mxu0 0.0
    %2036 = vmatprep.subr.mxu0 0.0
    %2037 = vmatpush1.msra.mxu0 0.0
    %2038 = vmatprep.subr.mxu0 0.0
    %2039 = vmatpush1.msra.mxu0 0.0
    %2040 = vmatprep.subr.mxu0 0.0
    %2041 = vmatpush1.msra.mxu0 0.0
    %2042 = vmatprep.subr.mxu0 0.0
    %2043 = vmatpush1.msra.mxu0 0.0
    %2044 = vmatprep.subr.mxu0 0.0
    %2045 = vmatpush1.msra.mxu0 0.0
    %2046 = vmatprep.subr.mxu0 0.0
    %2047 = vmatpush1.msra.mxu0 0.0
    %2048 = vmatprep.subr.mxu0 0.0
    %2049 = vmatpush1.msra.mxu0 0.0
    %2050 = vmatprep.subr.mxu0 0.0
    %2051 = vmatpush1.msra.mxu0 0.0
    %2052 = vmatprep.mubr.f32.mxu0 0.0
    %2053 = vmatmul.mubr.f32.gmra.mrb[0].mxu0 %v1986
    %v2054 = vpop.f32.mrb[0].mxu0
    %v2055 = vadd.f32 0.0, %v2054
    %v2056 = vpop.f32.mrb[0].mxu0
    %v2057 = vadd.f32 0.0, %v2056
    %2058 = vdwg.mxu0
    %2059 = vmatprep.subr.mxu0 %v822
    %2060 = vmatpush1.msra.mxu0 %v820
    %2061 = vmatprep.subr.mxu0 0.0
    %2062 = vmatpush1.msra.mxu0 0.0
    %2063 = vmatprep.subr.mxu0 0.0
    %2064 = vmatpush1.msra.mxu0 0.0
    %2065 = vmatprep.subr.mxu0 0.0
    %2066 = vmatpush1.msra.mxu0 0.0
    %2067 = vmatprep.subr.mxu0 0.0
    %2068 = vmatpush1.msra.mxu0 0.0
    %2069 = vmatprep.subr.mxu0 0.0
    %2070 = vmatpush1.msra.mxu0 0.0
    %2071 = vmatprep.subr.mxu0 0.0
    %2072 = vmatpush1.msra.mxu0 0.0
    %2073 = vmatprep.subr.mxu0 0.0
    %2074 = vmatpush1.msra.mxu0 0.0
    %2075 = vmatprep.subr.mxu0 0.0
    %2076 = vmatpush1.msra.mxu0 0.0
    %2077 = vmatprep.subr.mxu0 0.0
    %2078 = vmatpush1.msra.mxu0 0.0
    %2079 = vmatprep.subr.mxu0 0.0
    %2080 = vmatpush1.msra.mxu0 0.0
    %2081 = vmatprep.subr.mxu0 0.0
    %2082 = vmatpush1.msra.mxu0 0.0
    %2083 = vmatprep.subr.mxu0 0.0
    %2084 = vmatpush1.msra.mxu0 0.0
    %2085 = vmatprep.subr.mxu0 0.0
    %2086 = vmatpush1.msra.mxu0 0.0
    %2087 = vmatprep.subr.mxu0 0.0
    %2088 = vmatpush1.msra.mxu0 0.0
    %2089 = vmatprep.subr.mxu0 0.0
    %2090 = vmatpush1.msra.mxu0 0.0
    %2091 = vmatprep.subr.mxu0 0.0
    %2092 = vmatpush1.msra.mxu0 0.0
    %2093 = vmatprep.subr.mxu0 0.0
    %2094 = vmatpush1.msra.mxu0 0.0
    %2095 = vmatprep.subr.mxu0 0.0
    %2096 = vmatpush1.msra.mxu0 0.0
    %2097 = vmatprep.subr.mxu0 0.0
    %2098 = vmatpush1.msra.mxu0 0.0
    %2099 = vmatprep.subr.mxu0 0.0
    %2100 = vmatpush1.msra.mxu0 0.0
    %2101 = vmatprep.subr.mxu0 0.0
    %2102 = vmatpush1.msra.mxu0 0.0
    %2103 = vmatprep.subr.mxu0 0.0
    %2104 = vmatpush1.msra.mxu0 0.0
    %2105 = vmatprep.subr.mxu0 0.0
    %2106 = vmatpush1.msra.mxu0 0.0
    %2107 = vmatprep.subr.mxu0 0.0
    %2108 = vmatpush1.msra.mxu0 0.0
    %2109 = vmatprep.subr.mxu0 0.0
    %2110 = vmatpush1.msra.mxu0 0.0
    %2111 = vmatprep.subr.mxu0 0.0
    %2112 = vmatpush1.msra.mxu0 0.0
    %2113 = vmatprep.subr.mxu0 0.0
    %2114 = vmatpush1.msra.mxu0 0.0
    %2115 = vmatprep.subr.mxu0 0.0
    %2116 = vmatpush1.msra.mxu0 0.0
    %2117 = vmatprep.subr.mxu0 0.0
    %2118 = vmatpush1.msra.mxu0 0.0
    %2119 = vmatprep.subr.mxu0 0.0
    %2120 = vmatpush1.msra.mxu0 0.0
    %2121 = vmatprep.subr.mxu0 0.0
    %2122 = vmatpush1.msra.mxu0 0.0
    %2123 = vmatprep.mubr.f32.mxu0 0.0
    %2124 = vmatmul.mubr.f32.gmra.mrb[0].mxu0 %v1986
    %v2125 = vpop.f32.mrb[0].mxu0
    %v2126 = vadd.f32 0.0, %v2125
    %v2127 = vpop.f32.mrb[0].mxu0
    %v2128 = vadd.f32 0.0, %v2127
    %2129 = vdwg.mxu0
    %v2134 = vcombine.low %v2055, %v2057
    %v2135 = vcombine.low %v2126, %v2128
    %v2136 = vrot.slane %v2134, 5
    %v2137 = vrot.slane %v2135, 5
    %v2140 = vadd.f32 %v1982, %v2136
    %v2141 = vadd.f32 %v1983, %v2137
    %v2144 = vlaneseq
    %v2145 = vshrl.u32 %v2144, 7
    %v2146 = vsub.s32 3, %v2145
    %v2147 = vrot.slane %v2140, %v2146
    %v2148 = vlaneseq
    %v2149 = vshrl.u32 %v2148, 7
    %v2150 = vsub.s32 7, %v2149
    %v2151 = vrot.slane %v2140, %v2150
    %v2152 = vlaneseq
    %v2153 = vshrl.u32 %v2152, 7
    %v2154 = vsub.s32 3, %v2153
    %v2155 = vrot.slane %v2141, %v2154
    %v2156 = vlaneseq
    %v2157 = vshrl.u32 %v2156, 7
    %v2158 = vsub.s32 7, %v2157
    %v2159 = vrot.slane %v2141, %v2158
    %v2164 = vlaneseq
    %v2165 = vshrl.u32 %v2164, 7
    %v2166 = vsub.s32 3, %v2165
    %v2167 = vrot.slane %v2147, %v2166
    %v2168 = vlaneseq
    %v2169 = vshrl.u32 %v2168, 7
    %v2170 = vsub.s32 3, %v2169
    %v2171 = vrot.slane %v2151, %v2170
    %v2172 = vlaneseq
    %v2173 = vshrl.u32 %v2172, 7
    %v2174 = vsub.s32 3, %v2173
    %v2175 = vrot.slane %v2155, %v2174
    %v2176 = vlaneseq
    %v2177 = vshrl.u32 %v2176, 7
    %v2178 = vsub.s32 3, %v2177
    %v2179 = vrot.slane %v2159, %v2178
    %v2180 = vadd.f32 %v1682, %v2167
    %v2181 = vadd.f32 %v1684, %v2171
    %v2182 = vadd.f32 %v1764, %v2175
    %v2183 = vadd.f32 %v1766, %v2179
    %v2184 = vmul.f32 %v2180, 0.01
    %v2185 = vmul.f32 %v2181, 0.01
    %v2186 = vmul.f32 %v2182, 0.01
    %v2187 = vmul.f32 %v2183, 0.01
    %v2188 = vmax.f32 %v2180, %v2184
    %v2189 = vmax.f32 %v2181, %v2185
    %v2190 = vmax.f32 %v2182, %v2186
    %v2191 = vmax.f32 %v2183, %v2187
    %v2192 = vld [vmem:[#allocation6] sm:$0xff]
    %v2193 = vld [vmem:[#allocation6 + $0x8] sm:$0xff]
    %v2194 = vld [vmem:[#allocation6 + $0x10] sm:$0xff]
    %v2195 = vld [vmem:[#allocation6 + $0x18] sm:$0xff]
    %v2196 = vld [vmem:[#allocation6 + $0x20] sm:$0xff]
    %v2197 = vld [vmem:[#allocation6 + $0x28] sm:$0xff]
    %v2198 = vld [vmem:[#allocation6 + $0x30] sm:$0xff]
    %v2199 = vld [vmem:[#allocation6 + $0x38] sm:$0xff]
    %v2200 = vld [vmem:[#allocation6 + $0x40] sm:$0xff]
    %v2201 = vld [vmem:[#allocation6 + $0x48] sm:$0xff]
    %v2202 = vld [vmem:[#allocation6 + $0x50] sm:$0xff]
    %v2203 = vld [vmem:[#allocation6 + $0x58] sm:$0xff]
    %v2204 = vld [vmem:[#allocation6 + $0x60] sm:$0xff]
    %v2205 = vld [vmem:[#allocation6 + $0x68] sm:$0xff]
    %v2206 = vld [vmem:[#allocation6 + $0x70] sm:$0xff]
    %v2207 = vld [vmem:[#allocation6 + $0x78] sm:$0xff]
    %v2208 = vld [vmem:[#allocation6 + $0x80] sm:$0xff]
    %v2209 = vld [vmem:[#allocation6 + $0x88] sm:$0xff]
    %v2210 = vld [vmem:[#allocation6 + $0x90] sm:$0xff]
    %v2211 = vld [vmem:[#allocation6 + $0x98] sm:$0xff]
    %v2212 = vld [vmem:[#allocation6 + $0xa0] sm:$0xff]
    %v2213 = vld [vmem:[#allocation6 + $0xa8] sm:$0xff]
    %v2214 = vld [vmem:[#allocation6 + $0xb0] sm:$0xff]
    %v2215 = vld [vmem:[#allocation6 + $0xb8] sm:$0xff]
    %v2216 = vld [vmem:[#allocation6 + $0xc0] sm:$0xff]
    %v2217 = vld [vmem:[#allocation6 + $0xc8] sm:$0xff]
    %v2218 = vld [vmem:[#allocation6 + $0xd0] sm:$0xff]
    %v2219 = vld [vmem:[#allocation6 + $0xd8] sm:$0xff]
    %v2220 = vld [vmem:[#allocation6 + $0xe0] sm:$0xff]
    %v2221 = vld [vmem:[#allocation6 + $0xe8] sm:$0xff]
    %v2222 = vld [vmem:[#allocation6 + $0xf0] sm:$0xff]
    %v2223 = vld [vmem:[#allocation6 + $0xf8] sm:$0xff]
    %v2224 = vld [vmem:[#allocation6 + $0x100] sm:$0xff]
    %v2225 = vld [vmem:[#allocation6 + $0x108] sm:$0xff]
    %v2226 = vld [vmem:[#allocation6 + $0x110] sm:$0xff]
    %v2227 = vld [vmem:[#allocation6 + $0x118] sm:$0xff]
    %v2228 = vld [vmem:[#allocation6 + $0x120] sm:$0xff]
    %v2229 = vld [vmem:[#allocation6 + $0x128] sm:$0xff]
    %v2230 = vld [vmem:[#allocation6 + $0x130] sm:$0xff]
    %v2231 = vld [vmem:[#allocation6 + $0x138] sm:$0xff]
    %v2232 = vld [vmem:[#allocation6 + $0x140] sm:$0xff]
    %v2233 = vld [vmem:[#allocation6 + $0x148] sm:$0xff]
    %v2234 = vld [vmem:[#allocation6 + $0x150] sm:$0xff]
    %v2235 = vld [vmem:[#allocation6 + $0x158] sm:$0xff]
    %v2236 = vld [vmem:[#allocation6 + $0x160] sm:$0xff]
    %v2237 = vld [vmem:[#allocation6 + $0x168] sm:$0xff]
    %v2238 = vld [vmem:[#allocation6 + $0x170] sm:$0xff]
    %v2239 = vld [vmem:[#allocation6 + $0x178] sm:$0xff]
    %v2240 = vld [vmem:[#allocation6 + $0x180] sm:$0xff]
    %v2241 = vld [vmem:[#allocation6 + $0x188] sm:$0xff]
    %v2242 = vld [vmem:[#allocation6 + $0x190] sm:$0xff]
    %v2243 = vld [vmem:[#allocation6 + $0x198] sm:$0xff]
    %v2244 = vld [vmem:[#allocation6 + $0x1a0] sm:$0xff]
    %v2245 = vld [vmem:[#allocation6 + $0x1a8] sm:$0xff]
    %v2246 = vld [vmem:[#allocation6 + $0x1b0] sm:$0xff]
    %v2247 = vld [vmem:[#allocation6 + $0x1b8] sm:$0xff]
    %v2248 = vld [vmem:[#allocation6 + $0x1c0] sm:$0xff]
    %v2249 = vld [vmem:[#allocation6 + $0x1c8] sm:$0xff]
    %v2250 = vld [vmem:[#allocation6 + $0x1d0] sm:$0xff]
    %v2251 = vld [vmem:[#allocation6 + $0x1d8] sm:$0xff]
    %v2252 = vld [vmem:[#allocation6 + $0x1e0] sm:$0xff]
    %v2253 = vld [vmem:[#allocation6 + $0x1e8] sm:$0xff]
    %v2254 = vld [vmem:[#allocation6 + $0x1f0] sm:$0xff]
    %v2255 = vld [vmem:[#allocation6 + $0x1f8] sm:$0xff]
    %v2257 = vsel %vm622, %v71, 0
    %v2260 = vsel %vm815, %v77, 0
    %2262 = vmatprep.subr.mxu0 0.0
    %2263 = vmatpush1.msra.mxu0 %v2260
    %2264 = vmatprep.subr.mxu0 0.0
    %2265 = vmatpush1.msra.mxu0 0.0
    %2266 = vmatprep.subr.mxu0 0.0
    %2267 = vmatpush1.msra.mxu0 0.0
    %2268 = vmatprep.subr.mxu0 0.0
    %2269 = vmatpush1.msra.mxu0 0.0
    %2270 = vmatprep.subr.mxu0 0.0
    %2271 = vmatpush1.msra.mxu0 0.0
    %2272 = vmatprep.subr.mxu0 0.0
    %2273 = vmatpush1.msra.mxu0 0.0
    %2274 = vmatprep.subr.mxu0 0.0
    %2275 = vmatpush1.msra.mxu0 0.0
    %2276 = vmatprep.subr.mxu0 0.0
    %2277 = vmatpush1.msra.mxu0 0.0
    %2278 = vmatprep.subr.mxu0 0.0
    %2279 = vmatpush1.msra.mxu0 0.0
    %2280 = vmatprep.subr.mxu0 0.0
    %2281 = vmatpush1.msra.mxu0 0.0
    %2282 = vmatprep.subr.mxu0 0.0
    %2283 = vmatpush1.msra.mxu0 0.0
    %2284 = vmatprep.subr.mxu0 0.0
    %2285 = vmatpush1.msra.mxu0 0.0
    %2286 = vmatprep.subr.mxu0 0.0
    %2287 = vmatpush1.msra.mxu0 0.0
    %2288 = vmatprep.subr.mxu0 0.0
    %2289 = vmatpush1.msra.mxu0 0.0
    %2290 = vmatprep.subr.mxu0 0.0
    %2291 = vmatpush1.msra.mxu0 0.0
    %2292 = vmatprep.subr.mxu0 0.0
    %2293 = vmatpush1.msra.mxu0 0.0
    %2294 = vmatprep.subr.mxu0 0.0
    %2295 = vmatpush1.msra.mxu0 0.0
    %2296 = vmatprep.subr.mxu0 0.0
    %2297 = vmatpush1.msra.mxu0 0.0
    %2298 = vmatprep.subr.mxu0 0.0
    %2299 = vmatpush1.msra.mxu0 0.0
    %2300 = vmatprep.subr.mxu0 0.0
    %2301 = vmatpush1.msra.mxu0 0.0
    %2302 = vmatprep.subr.mxu0 0.0
    %2303 = vmatpush1.msra.mxu0 0.0
    %2304 = vmatprep.subr.mxu0 0.0
    %2305 = vmatpush1.msra.mxu0 0.0
    %2306 = vmatprep.subr.mxu0 0.0
    %2307 = vmatpush1.msra.mxu0 0.0
    %2308 = vmatprep.subr.mxu0 0.0
    %2309 = vmatpush1.msra.mxu0 0.0
    %2310 = vmatprep.subr.mxu0 0.0
    %2311 = vmatpush1.msra.mxu0 0.0
    %2312 = vmatprep.subr.mxu0 0.0
    %2313 = vmatpush1.msra.mxu0 0.0
    %2314 = vmatprep.subr.mxu0 0.0
    %2315 = vmatpush1.msra.mxu0 0.0
    %2316 = vmatprep.subr.mxu0 0.0
    %2317 = vmatpush1.msra.mxu0 0.0
    %2318 = vmatprep.subr.mxu0 0.0
    %2319 = vmatpush1.msra.mxu0 0.0
    %2320 = vmatprep.subr.mxu0 0.0
    %2321 = vmatpush1.msra.mxu0 0.0
    %2322 = vmatprep.subr.mxu0 0.0
    %2323 = vmatpush1.msra.mxu0 0.0
    %2324 = vmatprep.subr.mxu0 0.0
    %2325 = vmatpush1.msra.mxu0 0.0
    %2326 = vmatprep.mubr.f32.mxu0 0.0
    %2327 = vmatmul.mubr.f32.gmra.mrb[0].mxu0 %v2257
    %v2328 = vpop.f32.mrb[0].mxu0
    %v2329 = vadd.f32 0.0, %v2328
    %v2330 = vpop.f32.mrb[0].mxu0
    %2331 = vdwg.mxu0
    %2332 = vmatprep.subr.mxu0 0.0
    %2333 = vmatpush1.msra.mxu0 %v2192
    %2334 = vmatprep.subr.mxu0 0.0
    %2335 = vmatpush1.msra.mxu0 %v2193
    %2336 = vmatprep.subr.mxu0 0.0
    %2337 = vmatpush1.msra.mxu0 %v2194
    %2338 = vmatprep.subr.mxu0 0.0
    %2339 = vmatpush1.msra.mxu0 %v2195
    %2340 = vmatprep.subr.mxu0 0.0
    %2341 = vmatpush1.msra.mxu0 %v2196
    %2342 = vmatprep.subr.mxu0 0.0
    %2343 = vmatpush1.msra.mxu0 %v2197
    %2344 = vmatprep.subr.mxu0 0.0
    %2345 = vmatpush1.msra.mxu0 %v2198
    %2346 = vmatprep.subr.mxu0 0.0
    %2347 = vmatpush1.msra.mxu0 %v2199
    %2348 = vmatprep.subr.mxu0 0.0
    %2349 = vmatpush1.msra.mxu0 %v2200
    %2350 = vmatprep.subr.mxu0 0.0
    %2351 = vmatpush1.msra.mxu0 %v2201
    %2352 = vmatprep.subr.mxu0 0.0
    %2353 = vmatpush1.msra.mxu0 %v2202
    %2354 = vmatprep.subr.mxu0 0.0
    %2355 = vmatpush1.msra.mxu0 %v2203
    %2356 = vmatprep.subr.mxu0 0.0
    %2357 = vmatpush1.msra.mxu0 %v2204
    %2358 = vmatprep.subr.mxu0 0.0
    %2359 = vmatpush1.msra.mxu0 %v2205
    %2360 = vmatprep.subr.mxu0 0.0
    %2361 = vmatpush1.msra.mxu0 %v2206
    %2362 = vmatprep.subr.mxu0 0.0
    %2363 = vmatpush1.msra.mxu0 %v2207
    %2364 = vmatprep.subr.mxu0 0.0
    %2365 = vmatpush1.msra.mxu0 %v2208
    %2366 = vmatprep.subr.mxu0 0.0
    %2367 = vmatpush1.msra.mxu0 %v2209
    %2368 = vmatprep.subr.mxu0 0.0
    %2369 = vmatpush1.msra.mxu0 %v2210
    %2370 = vmatprep.subr.mxu0 0.0
    %2371 = vmatpush1.msra.mxu0 %v2211
    %2372 = vmatprep.subr.mxu0 0.0
    %2373 = vmatpush1.msra.mxu0 %v2212
    %2374 = vmatprep.subr.mxu0 0.0
    %2375 = vmatpush1.msra.mxu0 %v2213
    %2376 = vmatprep.subr.mxu0 0.0
    %2377 = vmatpush1.msra.mxu0 %v2214
    %2378 = vmatprep.subr.mxu0 0.0
    %2379 = vmatpush1.msra.mxu0 %v2215
    %2380 = vmatprep.subr.mxu0 0.0
    %2381 = vmatpush1.msra.mxu0 %v2216
    %2382 = vmatprep.subr.mxu0 0.0
    %2383 = vmatpush1.msra.mxu0 %v2217
    %2384 = vmatprep.subr.mxu0 0.0
    %2385 = vmatpush1.msra.mxu0 %v2218
    %2386 = vmatprep.subr.mxu0 0.0
    %2387 = vmatpush1.msra.mxu0 %v2219
    %2388 = vmatprep.subr.mxu0 0.0
    %2389 = vmatpush1.msra.mxu0 %v2220
    %2390 = vmatprep.subr.mxu0 0.0
    %2391 = vmatpush1.msra.mxu0 %v2221
    %2392 = vmatprep.subr.mxu0 0.0
    %2393 = vmatpush1.msra.mxu0 %v2222
    %2394 = vmatprep.subr.mxu0 0.0
    %2395 = vmatpush1.msra.mxu0 %v2223
    %2396 = vmatprep.mubr.f32.mxu0 %v2189
    %2397 = vmatmul.mubr.f32.gmra.mrb[0].mxu0 %v2188
    %v2398 = vpop.f32.mrb[0].mxu0
    %v2399 = vadd.f32 %v2329, %v2398
    %v2400 = vpop.f32.mrb[0].mxu0
    %2401 = vdwg.mxu0
    %2402 = vmatprep.subr.mxu0 0.0
    %2403 = vmatpush1.msra.mxu0 %v2224
    %2404 = vmatprep.subr.mxu0 0.0
    %2405 = vmatpush1.msra.mxu0 %v2225
    %2406 = vmatprep.subr.mxu0 0.0
    %2407 = vmatpush1.msra.mxu0 %v2226
    %2408 = vmatprep.subr.mxu0 0.0
    %2409 = vmatpush1.msra.mxu0 %v2227
    %2410 = vmatprep.subr.mxu0 0.0
    %2411 = vmatpush1.msra.mxu0 %v2228
    %2412 = vmatprep.subr.mxu0 0.0
    %2413 = vmatpush1.msra.mxu0 %v2229
    %2414 = vmatprep.subr.mxu0 0.0
    %2415 = vmatpush1.msra.mxu0 %v2230
    %2416 = vmatprep.subr.mxu0 0.0
    %2417 = vmatpush1.msra.mxu0 %v2231
    %2418 = vmatprep.subr.mxu0 0.0
    %2419 = vmatpush1.msra.mxu0 %v2232
    %2420 = vmatprep.subr.mxu0 0.0
    %2421 = vmatpush1.msra.mxu0 %v2233
    %2422 = vmatprep.subr.mxu0 0.0
    %2423 = vmatpush1.msra.mxu0 %v2234
    %2424 = vmatprep.subr.mxu0 0.0
    %2425 = vmatpush1.msra.mxu0 %v2235
    %2426 = vmatprep.subr.mxu0 0.0
    %2427 = vmatpush1.msra.mxu0 %v2236
    %2428 = vmatprep.subr.mxu0 0.0
    %2429 = vmatpush1.msra.mxu0 %v2237
    %2430 = vmatprep.subr.mxu0 0.0
    %2431 = vmatpush1.msra.mxu0 %v2238
    %2432 = vmatprep.subr.mxu0 0.0
    %2433 = vmatpush1.msra.mxu0 %v2239
    %2434 = vmatprep.subr.mxu0 0.0
    %2435 = vmatpush1.msra.mxu0 %v2240
    %2436 = vmatprep.subr.mxu0 0.0
    %2437 = vmatpush1.msra.mxu0 %v2241
    %2438 = vmatprep.subr.mxu0 0.0
    %2439 = vmatpush1.msra.mxu0 %v2242
    %2440 = vmatprep.subr.mxu0 0.0
    %2441 = vmatpush1.msra.mxu0 %v2243
    %2442 = vmatprep.subr.mxu0 0.0
    %2443 = vmatpush1.msra.mxu0 %v2244
    %2444 = vmatprep.subr.mxu0 0.0
    %2445 = vmatpush1.msra.mxu0 %v2245
    %2446 = vmatprep.subr.mxu0 0.0
    %2447 = vmatpush1.msra.mxu0 %v2246
    %2448 = vmatprep.subr.mxu0 0.0
    %2449 = vmatpush1.msra.mxu0 %v2247
    %2450 = vmatprep.subr.mxu0 0.0
    %2451 = vmatpush1.msra.mxu0 %v2248
    %2452 = vmatprep.subr.mxu0 0.0
    %2453 = vmatpush1.msra.mxu0 %v2249
    %2454 = vmatprep.subr.mxu0 0.0
    %2455 = vmatpush1.msra.mxu0 %v2250
    %2456 = vmatprep.subr.mxu0 0.0
    %2457 = vmatpush1.msra.mxu0 %v2251
    %2458 = vmatprep.subr.mxu0 0.0
    %2459 = vmatpush1.msra.mxu0 %v2252
    %2460 = vmatprep.subr.mxu0 0.0
    %2461 = vmatpush1.msra.mxu0 %v2253
    %2462 = vmatprep.subr.mxu0 0.0
    %2463 = vmatpush1.msra.mxu0 %v2254
    %2464 = vmatprep.subr.mxu0 0.0
    %2465 = vmatpush1.msra.mxu0 %v2255
    %2466 = vmatprep.mubr.f32.mxu0 %v2191
    %2467 = vmatmul.mubr.f32.gmra.mrb[0].mxu0 %v2190
    %v2468 = vpop.f32.mrb[0].mxu0
    %v2469 = vadd.f32 %v2399, %v2468
    %v2470 = vpop.f32.mrb[0].mxu0
    %2471 = vdwg.mxu0
    %v2472 = vlaneseq
    %v2473 = vshrl.u32 %v2472, 7
    %v2474 = vsub.s32 4, %v2473
    %v2475 = vrot.slane %v72, %v2474
    %v2476 = vadd.f32 %v2469, %v2475
    %2477 = vst [vmem:[%s8] sm:$0xff] %v2476
    // Predicated region
    $region46: #{pose_vae_encoder.1} parent=1 // pred_check
      _
    $region47: #{pose_vae_encoder.1} parent=1 // pred_check_branch
      %2479 = sbr.rel (0) target = $region49
    $region48: #{pose_vae_encoder.1} parent=1 // pred_region
      _
    $region49: #{pose_vae_encoder.1} parent=1 // pred_fallthru
      _
    // Predicated region
    $region50: #{pose_vae_encoder.1} parent=1 // pred_check
      _
    $region51: #{pose_vae_encoder.1} parent=1 // pred_check_branch
      %2481 = sbr.rel (0) target = $region53
    $region52: #{pose_vae_encoder.1} parent=1 // pred_region
      _
    $region53: #{pose_vae_encoder.1} parent=1 // pred_fallthru
      _
    %2482 = vsyncpa [#allocation3], 1
    %2483 = vsyncpa [#allocation5], 1

</llo_original>
